<compile_context>
chip_gen: v5e
topology: v5e:2x2
jax: 0.10.0
libtpu: 0.0.40
codegen_flags: <defaults>
</compile_context>

<pallas_src>
import math
import jax
import jax.numpy as jnp
from jax import lax
from jax.experimental import pallas as pl
from jax.experimental.pallas import tpu as pltpu

# ---- small, module-consistent hyper-parameters -------------------------------
PAD          = 0        # EventElementType.PAD
N_TYPES      = 8
N_STAFF      = 4
N_STAFF_PAD  = 8        # one-hot width padded to 8 (lanes 4..7 never hot)
D_FEATURE    = 8
D_POSITION   = 32       # per-coordinate sinusoid width (x, y1, y2, beading_pos)
ANGLE_CYCLE  = 1000.0
D_MODEL      = 128
D_INNER      = 256
N_HEAD       = 4
D_K          = 32
D_V          = 32
N_LAYERS     = 1
VEC_CHANNELS = 4        # RectifierParser2.VEC_CHANNELS (synthetic)

_DPH    = D_POSITION // 2      # sin / cos half width per coordinate
D_PE    = 4 * D_POSITION       # 128 = full PE width (fits one lane tile)
OUT_PAD = 128                  # lane-dense output width
LN_EPS  = 1e-5                 # matches torch.nn.LayerNorm default


def _layernorm(v, g, b, eps=LN_EPS):
    mu = jnp.mean(v, axis=-1, keepdims=True)
    var = jnp.mean(jnp.square(v - mu), axis=-1, keepdims=True)
    return (v - mu) * lax.rsqrt(var + eps) * g + b


# ==============================================================================
# Fused kernel: encode -> transformer layer(s) -> output head  (single call,
# no grid, everything resident in VMEM)
# ==============================================================================
def _fused_kernel(stype_ref, staff_ref, feat_ref,
                  x_ref, y1_ref, y2_ref, bp_ref,
                  seqq_ref, seqk_ref,
                  fr_ref, phase_ref,
                  et_ref, es_ref, wf_ref, wp_ref, benc_ref,
                  wqkv_ref, wo_ref,
                  ln1g_ref, ln1b_ref, w1_ref, b1_ref, w2_ref, b2_ref,
                  ln2g_ref, ln2b_ref,
                  wout_ref, bout_ref,
                  out_ref):
    BN = out_ref.shape[0]

    # ---- stage 1: event encoding, built entirely in-VMEM ---------------------
    # one-hot(type) / one-hot(staff) via iota compare (VPU), embedded on the MXU.
    t_iota = lax.broadcasted_iota(jnp.int32, (BN, N_TYPES), 1)
    s_iota = lax.broadcasted_iota(jnp.int32, (BN, N_STAFF_PAD), 1)
    oh_t = jnp.where(t_iota == stype_ref[...], 1.0, 0.0).astype(jnp.bfloat16)
    oh_s = jnp.where(s_iota == staff_ref[...], 1.0, 0.0).astype(jnp.bfloat16)

    # sinusoidal PE: ang = sum_c pos_c * freq_row_c + phase  (exact f32 on VPU;
    # the cos half of each 32-lane coordinate block carries a +pi/2 phase so a
    # single jnp.sin pass produces both sin and cos lanes).
    fr = fr_ref[...]                                        # (4, 128) f32
    ang = (phase_ref[...]
           + x_ref[...] * fr[0:1]
           + y1_ref[...] * fr[1:2]
           + y2_ref[...] * fr[2:3]
           + bp_ref[...] * fr[3:4])                         # (BN, 128) f32
    pe = jnp.sin(ang).astype(jnp.bfloat16)                  # (BN, 128)

    h = (jnp.dot(oh_t, et_ref[...], preferred_element_type=jnp.float32)
         + jnp.dot(oh_s, es_ref[...], preferred_element_type=jnp.float32)
         + jnp.dot(feat_ref[...].astype(jnp.bfloat16), wf_ref[...],
                   preferred_element_type=jnp.float32)
         + jnp.dot(pe, wp_ref[...], preferred_element_type=jnp.float32)
         + benc_ref[...])                                   # (BN, D_MODEL) f32

    # ---- attention mask (block-diagonal same-sequence + key-PAD), O(BN) input -
    # PAD keys carry seq-id -1, which never matches a query's seq-id.
    bias = jnp.where(seqq_ref[...] == seqk_ref[...], 0.0, -1e9)   # (BN, BN) f32
    scale = 1.0 / math.sqrt(D_K)

    # lane-index map used to give each head its own 32-lane block
    lane = lax.broadcasted_iota(jnp.int32, (BN, D_MODEL), 1)

    # ---- stage 2: transformer encoder layer(s) (post-norm MHA + FFN, eval) ---
    for li in range(N_LAYERS):
        xb = h.astype(jnp.bfloat16)

        # fused QKV projection: one (BN,128)@(128,384) MXU pass group
        qkv = jnp.dot(xb, wqkv_ref[li], preferred_element_type=jnp.float32)   # (BN, 384)
        q_all = qkv[:, 0:D_MODEL]                     # lane-tile-aligned slices
        k_all = qkv[:, D_MODEL:2 * D_MODEL]
        v_all = qkv[:, 2 * D_MODEL:3 * D_MODEL]
        q_b = q_all.astype(jnp.bfloat16)

        # Per-head attention.  Each head owns lanes [hd*32, (hd+1)*32); masking
        # K/V to that block and contracting full-width is identical to taking
        # 32-lane slices, and accumulating p @ V_masked directly builds the
        # lane-concatenated (BN,128) head output without any concat.
        attn_cat = jnp.zeros((BN, D_MODEL), jnp.float32)
        for hd in range(N_HEAD):
            m = (lane >= hd * D_K) & (lane < (hd + 1) * D_K)
            kh = jnp.where(m, k_all, 0.0).astype(jnp.bfloat16)
            vh = jnp.where(m, v_all, 0.0).astype(jnp.bfloat16)
            s = lax.dot_general(q_b, kh, (((1,), (1,)), ((), ())),
                                preferred_element_type=jnp.float32)   # (BN, BN)
            s = s * scale + bias
            s = s - jnp.max(s, axis=-1, keepdims=True)
            p = jnp.exp(s)
            p = p * pl.reciprocal(jnp.sum(p, axis=-1, keepdims=True), approx=True)
            attn_cat = attn_cat + jnp.dot(p.astype(jnp.bfloat16), vh,
                                          preferred_element_type=jnp.float32)

        # fused output projection: ONE (BN,128)@(128,128) matmul
        attn = jnp.dot(attn_cat.astype(jnp.bfloat16), wo_ref[li],
                       preferred_element_type=jnp.float32)

        x1 = _layernorm(h + attn, ln1g_ref[li], ln1b_ref[li])

        hdn = jnp.maximum(
            jnp.dot(x1.astype(jnp.bfloat16), w1_ref[li],
                    preferred_element_type=jnp.float32) + b1_ref[li], 0.0)
        ff = jnp.dot(hdn.astype(jnp.bfloat16), w2_ref[li],
                     preferred_element_type=jnp.float32) + b2_ref[li]
        h = _layernorm(x1 + ff, ln2g_ref[li], ln2b_ref[li])

    # ---- stage 3: output head — lane-dense (BN, 128) store --------------------
    out_ref[...] = jnp.dot(h.astype(jnp.bfloat16), wout_ref[...],
                           preferred_element_type=jnp.float32) + bout_ref[...]


def _fused_forward(p, stype_col, staff_col, feat, x_col, y1_col, y2_col, bp_col,
                   seq_q, seq_k):
    BN = stype_col.shape[0]
    # No grid: total resident footprint (~0.5 MiB) fits VMEM on all generations;
    # nothing to stream, so no pipelining machinery.
    return pl.pallas_call(
        _fused_kernel,
        out_shape=jax.ShapeDtypeStruct((BN, OUT_PAD), jnp.float32),
        compiler_params=pltpu.CompilerParams(vmem_limit_bytes=32 * 1024 * 1024),
    )(stype_col, staff_col, feat, x_col, y1_col, y2_col, bp_col,
      seq_q, seq_k,
      p["freq_rows"], p["phase_row"],
      p["E_type"], p["E_staff"], p["W_f"], p["W_p"], p["b_enc"],
      p["Wqkv"], p["Wo"],
      p["ln1_g"], p["ln1_b"], p["W1"], p["b1"], p["W2"], p["b2"],
      p["ln2_g"], p["ln2_b"],
      p["W_out"], p["b_out"])


# ==============================================================================
# Parameters (deterministic synthetic init)
# ==============================================================================
def init_params(key):
    def lin(k, fan_in, shape, dtype=jnp.float32):
        bound = 1.0 / math.sqrt(fan_in)
        return jax.random.uniform(k, shape, jnp.float32, -bound, bound).astype(dtype)

    keys = jax.random.split(key, 8 + N_LAYERS)

    # per-coordinate frequency rows & phase row for the in-kernel PE
    freqs = jnp.asarray(
        [1.0 / (ANGLE_CYCLE ** (2.0 * j / D_POSITION)) for j in range(_DPH)],
        dtype=jnp.float32)
    frow = jnp.zeros((4, D_PE), jnp.float32)
    phase = jnp.zeros((1, D_PE), jnp.float32)
    for c in range(4):
        lo = c * D_POSITION
        frow = frow.at[c, lo:lo + _DPH].set(freqs)                 # sin lanes
        frow = frow.at[c, lo + _DPH:lo + D_POSITION].set(freqs)    # cos lanes
        phase = phase.at[0, lo + _DPH:lo + D_POSITION].set(math.pi / 2.0)

    e_type = lin(keys[0], D_MODEL, (N_TYPES, D_MODEL), jnp.bfloat16)
    e_staff = lin(keys[1], D_MODEL, (N_STAFF, D_MODEL))
    e_staff = jnp.pad(e_staff, ((0, N_STAFF_PAD - N_STAFF), (0, 0))).astype(jnp.bfloat16)
    w_f = lin(keys[2], D_FEATURE, (D_FEATURE, D_MODEL), jnp.bfloat16)
    w_p = lin(keys[3], D_PE, (D_PE, D_MODEL), jnp.bfloat16)

    # output head padded to 128 lanes (only first 1 + VEC_CHANNELS cols real)
    w_out = lin(keys[4], D_MODEL, (D_MODEL, 1 + VEC_CHANNELS))
    w_out = jnp.pad(w_out, ((0, 0), (0, OUT_PAD - (1 + VEC_CHANNELS)))).astype(jnp.bfloat16)

    params = {
        "freq_rows": frow, "phase_row": phase,
        "E_type": e_type, "E_staff": e_staff, "W_f": w_f, "W_p": w_p,
        "b_enc": jnp.zeros((1, D_MODEL), jnp.float32),
        "W_out": w_out, "b_out": jnp.zeros((1, OUT_PAD), jnp.float32),
    }

    wqkv, wo, ln1g, ln1b, w1, b1, w2, b2, ln2g, ln2b = ([] for _ in range(10))
    for li in range(N_LAYERS):
        lk = jax.random.split(keys[5 + li], 8)
        # fused QKV weight, lanes = [Q heads(128) | K heads(128) | V heads(128)]
        wq = lin(lk[0], D_MODEL, (D_MODEL, N_HEAD * D_K))
        wk = lin(lk[1], D_MODEL, (D_MODEL, N_HEAD * D_K))
        wv = lin(lk[2], D_MODEL, (D_MODEL, N_HEAD * D_V))
        wqkv.append(jnp.concatenate([wq, wk, wv], axis=-1).astype(jnp.bfloat16))
        # fused Wo: rows = [head0(32); head1; head2; head3]
        wo.append(lin(lk[3], N_HEAD * D_V, (N_HEAD * D_V, D_MODEL), jnp.bfloat16))
        ln1g.append(jnp.ones((1, D_MODEL), jnp.float32))
        ln1b.append(jnp.zeros((1, D_MODEL), jnp.float32))
        w1.append(lin(lk[4], D_MODEL, (D_MODEL, D_INNER), jnp.bfloat16))
        b1.append(jnp.zeros((1, D_INNER), jnp.float32))
        w2.append(lin(lk[5], D_INNER, (D_INNER, D_MODEL), jnp.bfloat16))
        b2.append(jnp.zeros((1, D_MODEL), jnp.float32))
        ln2g.append(jnp.ones((1, D_MODEL), jnp.float32))
        ln2b.append(jnp.zeros((1, D_MODEL), jnp.float32))

    params.update({
        "Wqkv": jnp.stack(wqkv), "Wo": jnp.stack(wo),
        "ln1_g": jnp.stack(ln1g), "ln1_b": jnp.stack(ln1b),
        "W1": jnp.stack(w1), "b1": jnp.stack(b1),
        "W2": jnp.stack(w2), "b2": jnp.stack(b2),
        "ln2_g": jnp.stack(ln2g), "ln2_b": jnp.stack(ln2b),
    })
    return params


# ==============================================================================
# Full forward
# ==============================================================================
def bead_picker_forward(params, stype, staff, feature, x, y1, y2, beading_pos):
    B, N = stype.shape
    BN = B * N

    # --- minimal wrapper glue: only reshapes + two O(BN) seq-id vectors --------
    stype_col = stype.reshape(BN, 1).astype(jnp.int32)
    staff_col = staff.reshape(BN, 1).astype(jnp.int32)
    feat = feature.reshape(BN, D_FEATURE).astype(jnp.float32)
    x_col = x.reshape(BN, 1).astype(jnp.float32)
    y1_col = y1.reshape(BN, 1).astype(jnp.float32)
    y2_col = y2.reshape(BN, 1).astype(jnp.float32)
    bp_col = beading_pos.reshape(BN, 1).astype(jnp.float32)

    sid = jnp.arange(BN, dtype=jnp.int32) // N
    seq_q = sid.reshape(BN, 1)                                       # query seq-ids
    seq_k = jnp.where(stype.reshape(BN) != PAD, sid, -1).reshape(1, BN)  # PAD keys -> -1

    out = _fused_forward(params, stype_col, staff_col, feat,
                         x_col, y1_col, y2_col, bp_col, seq_q, seq_k)
    out = out.reshape(B, N, OUT_PAD)

    successor = jax.nn.sigmoid(out[..., 0])             # sigmoid(x[:, :, 0])
    rec = out[..., 1:1 + VEC_CHANNELS]                  # (B, N, VEC_CHANNELS)
    # TODO(synk): RectifierParser2's parsing of the VEC_CHANNELS is not in the
    # reference source; raw rectifier channels are returned unparsed.
    return successor, rec


# ==============================================================================
if __name__ == "__main__":
    B, N = 2, 16
    key = jax.random.PRNGKey(0)
    k_param, k_st, k_sf, k_ft, k_x, k_y1, k_y2, k_bp = jax.random.split(key, 8)

    params = init_params(k_param)

    stype = jax.random.randint(k_st, (B, N), 0, N_TYPES, dtype=jnp.int32)   # 0 == PAD
    staff = jax.random.randint(k_sf, (B, N), 0, N_STAFF, dtype=jnp.int32)
    feature = jax.random.normal(k_ft, (B, N, D_FEATURE), dtype=jnp.float32)
    x = jax.random.uniform(k_x, (B, N), jnp.float32, 0.0, 100.0)
    y1 = jax.random.uniform(k_y1, (B, N), jnp.float32, 0.0, 100.0)
    y2 = jax.random.uniform(k_y2, (B, N), jnp.float32, 0.0, 100.0)
    beading_pos = jax.random.randint(k_bp, (B, N), 0, 16, dtype=jnp.int32)

    fwd = jax.jit(bead_picker_forward)
    successor, rec = fwd(params, stype, staff, feature, x, y1, y2, beading_pos)
    jax.block_until_ready((successor, rec))

    assert successor.shape == (B, N)
    assert rec.shape == (B, N, VEC_CHANNELS)
    assert bool(jnp.all(jnp.isfinite(successor))) and bool(jnp.all(jnp.isfinite(rec)))
    print("KERNEL_OK")
</pallas_src>

<mosaic_0001>
module attributes {stable_mosaic.version = 11 : i64} {
  func.func @_fused_kernel(%arg0: memref<32x1xi32, #tpu.memory_space<vmem>>, %arg1: memref<32x1xi32, #tpu.memory_space<vmem>>, %arg2: memref<32x8xf32, #tpu.memory_space<vmem>>, %arg3: memref<32x1xf32, #tpu.memory_space<vmem>>, %arg4: memref<32x1xf32, #tpu.memory_space<vmem>>, %arg5: memref<32x1xf32, #tpu.memory_space<vmem>>, %arg6: memref<32x1xf32, #tpu.memory_space<vmem>>, %arg7: memref<32x1xi32, #tpu.memory_space<vmem>>, %arg8: memref<1x32xi32, #tpu.memory_space<vmem>>, %arg9: memref<4x128xf32, #tpu.memory_space<vmem>>, %arg10: memref<1x128xf32, #tpu.memory_space<vmem>>, %arg11: memref<8x128xbf16, #tpu.memory_space<vmem>>, %arg12: memref<8x128xbf16, #tpu.memory_space<vmem>>, %arg13: memref<8x128xbf16, #tpu.memory_space<vmem>>, %arg14: memref<128x128xbf16, #tpu.memory_space<vmem>>, %arg15: memref<1x128xf32, #tpu.memory_space<vmem>>, %arg16: memref<1x128x384xbf16, #tpu.memory_space<vmem>>, %arg17: memref<1x128x128xbf16, #tpu.memory_space<vmem>>, %arg18: memref<1x1x128xf32, #tpu.memory_space<vmem>>, %arg19: memref<1x1x128xf32, #tpu.memory_space<vmem>>, %arg20: memref<1x128x256xbf16, #tpu.memory_space<vmem>>, %arg21: memref<1x1x256xf32, #tpu.memory_space<vmem>>, %arg22: memref<1x256x128xbf16, #tpu.memory_space<vmem>>, %arg23: memref<1x1x128xf32, #tpu.memory_space<vmem>>, %arg24: memref<1x1x128xf32, #tpu.memory_space<vmem>>, %arg25: memref<1x1x128xf32, #tpu.memory_space<vmem>>, %arg26: memref<128x128xbf16, #tpu.memory_space<vmem>>, %arg27: memref<1x128xf32, #tpu.memory_space<vmem>>, %arg28: memref<32x128xf32, #tpu.memory_space<vmem>>) attributes {dimension_semantics = [], scalar_prefetch = 0 : i64, scratch_operands = 0 : i64, tpu.core_type = #tpu.core_type<tc>} {
    %0 = tpu.iota {dimensions = array<i32: 1>} : vector<32x8xi32>
    %1 = tpu.iota {dimensions = array<i32: 1>} : vector<32x8xi32>
    %c0 = arith.constant 0 : index
    %c0_0 = arith.constant 0 : index
    %2 = vector.load %arg0[%c0, %c0_0] : memref<32x1xi32, #tpu.memory_space<vmem>>, vector<32x1xi32>
    %3 = vector.broadcast %2 : vector<32x1xi32> to vector<32x8xi32>
    %4 = arith.cmpi eq, %0, %3 : vector<32x8xi32>
    %cst = arith.constant 1.000000e+00 : f32
    %cst_1 = arith.constant 0.000000e+00 : f32
    %5 = vector.broadcast %cst : f32 to vector<32x8xf32>
    %6 = vector.broadcast %cst_1 : f32 to vector<32x8xf32>
    %7 = arith.select %4, %5, %6 : vector<32x8xi1>, vector<32x8xf32>
    %8 = arith.truncf %7 : vector<32x8xf32> to vector<32x8xbf16>
    %c0_2 = arith.constant 0 : index
    %c0_3 = arith.constant 0 : index
    %9 = vector.load %arg1[%c0_2, %c0_3] : memref<32x1xi32, #tpu.memory_space<vmem>>, vector<32x1xi32>
    %10 = vector.broadcast %9 : vector<32x1xi32> to vector<32x8xi32>
    %11 = arith.cmpi eq, %1, %10 : vector<32x8xi32>
    %cst_4 = arith.constant 1.000000e+00 : f32
    %cst_5 = arith.constant 0.000000e+00 : f32
    %12 = vector.broadcast %cst_4 : f32 to vector<32x8xf32>
    %13 = vector.broadcast %cst_5 : f32 to vector<32x8xf32>
    %14 = arith.select %11, %12, %13 : vector<32x8xi1>, vector<32x8xf32>
    %15 = arith.truncf %14 : vector<32x8xf32> to vector<32x8xbf16>
    %c0_6 = arith.constant 0 : index
    %c0_7 = arith.constant 0 : index
    %16 = vector.load %arg9[%c0_6, %c0_7] : memref<4x128xf32, #tpu.memory_space<vmem>>, vector<4x128xf32>
    %c0_8 = arith.constant 0 : index
    %c0_9 = arith.constant 0 : index
    %17 = vector.load %arg10[%c0_8, %c0_9] : memref<1x128xf32, #tpu.memory_space<vmem>>, vector<1x128xf32>
    %c0_10 = arith.constant 0 : index
    %c0_11 = arith.constant 0 : index
    %18 = vector.load %arg3[%c0_10, %c0_11] : memref<32x1xf32, #tpu.memory_space<vmem>>, vector<32x1xf32>
    %19 = vector.extract_strided_slice %16 {offsets = [0, 0], sizes = [1, 128], strides = [1, 1]} : vector<4x128xf32> to vector<1x128xf32>
    %20 = vector.broadcast %18 : vector<32x1xf32> to vector<32x128xf32>
    %21 = vector.broadcast %19 : vector<1x128xf32> to vector<32x128xf32>
    %22 = arith.mulf %20, %21 : vector<32x128xf32>
    %23 = vector.broadcast %17 : vector<1x128xf32> to vector<32x128xf32>
    %24 = arith.addf %23, %22 : vector<32x128xf32>
    %c0_12 = arith.constant 0 : index
    %c0_13 = arith.constant 0 : index
    %25 = vector.load %arg4[%c0_12, %c0_13] : memref<32x1xf32, #tpu.memory_space<vmem>>, vector<32x1xf32>
    %26 = vector.extract_strided_slice %16 {offsets = [1, 0], sizes = [1, 128], strides = [1, 1]} : vector<4x128xf32> to vector<1x128xf32>
    %27 = vector.broadcast %25 : vector<32x1xf32> to vector<32x128xf32>
    %28 = vector.broadcast %26 : vector<1x128xf32> to vector<32x128xf32>
    %29 = arith.mulf %27, %28 : vector<32x128xf32>
    %30 = arith.addf %24, %29 : vector<32x128xf32>
    %c0_14 = arith.constant 0 : index
    %c0_15 = arith.constant 0 : index
    %31 = vector.load %arg5[%c0_14, %c0_15] : memref<32x1xf32, #tpu.memory_space<vmem>>, vector<32x1xf32>
    %32 = vector.extract_strided_slice %16 {offsets = [2, 0], sizes = [1, 128], strides = [1, 1]} : vector<4x128xf32> to vector<1x128xf32>
    %33 = vector.broadcast %31 : vector<32x1xf32> to vector<32x128xf32>
    %34 = vector.broadcast %32 : vector<1x128xf32> to vector<32x128xf32>
    %35 = arith.mulf %33, %34 : vector<32x128xf32>
    %36 = arith.addf %30, %35 : vector<32x128xf32>
    %c0_16 = arith.constant 0 : index
    %c0_17 = arith.constant 0 : index
    %37 = vector.load %arg6[%c0_16, %c0_17] : memref<32x1xf32, #tpu.memory_space<vmem>>, vector<32x1xf32>
    %38 = vector.extract_strided_slice %16 {offsets = [3, 0], sizes = [1, 128], strides = [1, 1]} : vector<4x128xf32> to vector<1x128xf32>
    %39 = vector.broadcast %37 : vector<32x1xf32> to vector<32x128xf32>
    %40 = vector.broadcast %38 : vector<1x128xf32> to vector<32x128xf32>
    %41 = arith.mulf %39, %40 : vector<32x128xf32>
    %42 = arith.addf %36, %41 : vector<32x128xf32>
    %43 = math.sin %42 : vector<32x128xf32>
    %44 = arith.truncf %43 : vector<32x128xf32> to vector<32x128xbf16>
    %c0_18 = arith.constant 0 : index
    %c0_19 = arith.constant 0 : index
    %45 = vector.load %arg11[%c0_18, %c0_19] : memref<8x128xbf16, #tpu.memory_space<vmem>>, vector<8x128xbf16>
    %cst_20 = arith.constant dense<0.000000e+00> : vector<32x128xf32>
    %46 = tpu.matmul %8, %45, %cst_20 {dimension_numbers = #tpu.dot_dimension_numbers<[1], [0], [0], [1], [0, 0, 1, 1], [], []>} : vector<32x8xbf16>, vector<8x128xbf16>, vector<32x128xf32> -> vector<32x128xf32>
    %c0_21 = arith.constant 0 : index
    %c0_22 = arith.constant 0 : index
    %47 = vector.load %arg12[%c0_21, %c0_22] : memref<8x128xbf16, #tpu.memory_space<vmem>>, vector<8x128xbf16>
    %cst_23 = arith.constant dense<0.000000e+00> : vector<32x128xf32>
    %48 = tpu.matmul %15, %47, %cst_23 {dimension_numbers = #tpu.dot_dimension_numbers<[1], [0], [0], [1], [0, 0, 1, 1], [], []>} : vector<32x8xbf16>, vector<8x128xbf16>, vector<32x128xf32> -> vector<32x128xf32>
    %49 = arith.addf %46, %48 : vector<32x128xf32>
    %c0_24 = arith.constant 0 : index
    %c0_25 = arith.constant 0 : index
    %50 = vector.load %arg2[%c0_24, %c0_25] : memref<32x8xf32, #tpu.memory_space<vmem>>, vector<32x8xf32>
    %51 = arith.truncf %50 : vector<32x8xf32> to vector<32x8xbf16>
    %c0_26 = arith.constant 0 : index
    %c0_27 = arith.constant 0 : index
    %52 = vector.load %arg13[%c0_26, %c0_27] : memref<8x128xbf16, #tpu.memory_space<vmem>>, vector<8x128xbf16>
    %cst_28 = arith.constant dense<0.000000e+00> : vector<32x128xf32>
    %53 = tpu.matmul %51, %52, %cst_28 {dimension_numbers = #tpu.dot_dimension_numbers<[1], [0], [0], [1], [0, 0, 1, 1], [], []>} : vector<32x8xbf16>, vector<8x128xbf16>, vector<32x128xf32> -> vector<32x128xf32>
    %54 = arith.addf %49, %53 : vector<32x128xf32>
    %c0_29 = arith.constant 0 : index
    %c0_30 = arith.constant 0 : index
    %55 = vector.load %arg14[%c0_29, %c0_30] : memref<128x128xbf16, #tpu.memory_space<vmem>>, vector<128x128xbf16>
    %cst_31 = arith.constant dense<0.000000e+00> : vector<32x128xf32>
    %56 = tpu.matmul %44, %55, %cst_31 {dimension_numbers = #tpu.dot_dimension_numbers<[1], [0], [0], [1], [0, 0, 1, 1], [], []>} : vector<32x128xbf16>, vector<128x128xbf16>, vector<32x128xf32> -> vector<32x128xf32>
    %57 = arith.addf %54, %56 : vector<32x128xf32>
    %c0_32 = arith.constant 0 : index
    %c0_33 = arith.constant 0 : index
    %58 = vector.load %arg15[%c0_32, %c0_33] : memref<1x128xf32, #tpu.memory_space<vmem>>, vector<1x128xf32>
    %59 = vector.broadcast %58 : vector<1x128xf32> to vector<32x128xf32>
    %60 = arith.addf %57, %59 : vector<32x128xf32>
    %c0_34 = arith.constant 0 : index
    %c0_35 = arith.constant 0 : index
    %61 = vector.load %arg7[%c0_34, %c0_35] : memref<32x1xi32, #tpu.memory_space<vmem>>, vector<32x1xi32>
    %c0_36 = arith.constant 0 : index
    %c0_37 = arith.constant 0 : index
    %62 = vector.load %arg8[%c0_36, %c0_37] : memref<1x32xi32, #tpu.memory_space<vmem>>, vector<1x32xi32>
    %63 = vector.broadcast %61 : vector<32x1xi32> to vector<32x32xi32>
    %64 = vector.broadcast %62 : vector<1x32xi32> to vector<32x32xi32>
    %65 = arith.cmpi eq, %63, %64 : vector<32x32xi32>
    %cst_38 = arith.constant 0.000000e+00 : f32
    %cst_39 = arith.constant -1.000000e+09 : f32
    %66 = vector.broadcast %cst_38 : f32 to vector<32x32xf32>
    %67 = vector.broadcast %cst_39 : f32 to vector<32x32xf32>
    %68 = arith.select %65, %66, %67 : vector<32x32xi1>, vector<32x32xf32>
    %69 = tpu.iota {dimensions = array<i32: 1>} : vector<32x128xi32>
    %70 = arith.truncf %60 : vector<32x128xf32> to vector<32x128xbf16>
    %c0_40 = arith.constant 0 : index
    %c0_41 = arith.constant 0 : index
    %c0_42 = arith.constant 0 : index
    %71 = vector.load %arg16[%c0_40, %c0_41, %c0_42] : memref<1x128x384xbf16, #tpu.memory_space<vmem>>, vector<1x128x384xbf16>
    %72 = vector.shape_cast %71 : vector<1x128x384xbf16> to vector<128x384xbf16>
    %cst_43 = arith.constant dense<0.000000e+00> : vector<32x384xf32>
    %73 = tpu.matmul %70, %72, %cst_43 {dimension_numbers = #tpu.dot_dimension_numbers<[1], [0], [0], [1], [0, 0, 1, 1], [], []>} : vector<32x128xbf16>, vector<128x384xbf16>, vector<32x384xf32> -> vector<32x384xf32>
    %74 = vector.extract_strided_slice %73 {offsets = [0, 0], sizes = [32, 128], strides = [1, 1]} : vector<32x384xf32> to vector<32x128xf32>
    %75 = vector.extract_strided_slice %73 {offsets = [0, 128], sizes = [32, 128], strides = [1, 1]} : vector<32x384xf32> to vector<32x128xf32>
    %76 = vector.extract_strided_slice %73 {offsets = [0, 256], sizes = [32, 128], strides = [1, 1]} : vector<32x384xf32> to vector<32x128xf32>
    %77 = arith.truncf %74 : vector<32x128xf32> to vector<32x128xbf16>
    %cst_44 = arith.constant 0.000000e+00 : f32
    %78 = vector.broadcast %cst_44 : f32 to vector<32x128xf32>
    %c0_i32 = arith.constant 0 : i32
    %79 = vector.broadcast %c0_i32 : i32 to vector<32x128xi32>
    %80 = arith.cmpi sge, %69, %79 : vector<32x128xi32>
    %c32_i32 = arith.constant 32 : i32
    %81 = vector.broadcast %c32_i32 : i32 to vector<32x128xi32>
    %82 = arith.cmpi slt, %69, %81 : vector<32x128xi32>
    %83 = arith.andi %80, %82 : vector<32x128xi1>
    %cst_45 = arith.constant 0.000000e+00 : f32
    %84 = vector.broadcast %cst_45 : f32 to vector<32x128xf32>
    %85 = arith.select %83, %75, %84 : vector<32x128xi1>, vector<32x128xf32>
    %86 = arith.truncf %85 : vector<32x128xf32> to vector<32x128xbf16>
    %cst_46 = arith.constant 0.000000e+00 : f32
    %87 = vector.broadcast %cst_46 : f32 to vector<32x128xf32>
    %88 = arith.select %83, %76, %87 : vector<32x128xi1>, vector<32x128xf32>
    %89 = arith.truncf %88 : vector<32x128xf32> to vector<32x128xbf16>
    %cst_47 = arith.constant dense<0.000000e+00> : vector<32x32xf32>
    %90 = tpu.matmul %77, %86, %cst_47 {dimension_numbers = #tpu.dot_dimension_numbers<[1], [1], [0], [0], [0, 0, 1, 0], [], []>} : vector<32x128xbf16>, vector<32x128xbf16>, vector<32x32xf32> -> vector<32x32xf32>
    %cst_48 = arith.constant 0.176776692 : f32
    %91 = vector.broadcast %cst_48 : f32 to vector<32x32xf32>
    %92 = arith.mulf %90, %91 : vector<32x32xf32>
    %93 = arith.addf %92, %68 : vector<32x32xf32>
    %cst_49 = arith.constant dense<0xFF800000> : vector<32xf32>
    %94 = vector.multi_reduction <maximumf>, %93, %cst_49 [1] : vector<32x32xf32> to vector<32xf32>
    %95 = vector.shape_cast %94 : vector<32xf32> to vector<32x1xf32>
    %96 = vector.broadcast %95 : vector<32x1xf32> to vector<32x32xf32>
    %97 = arith.subf %93, %96 : vector<32x32xf32>
    %98 = math.exp %97 : vector<32x32xf32>
    %cst_50 = arith.constant dense<0.000000e+00> : vector<32xf32>
    %99 = vector.multi_reduction <add>, %98, %cst_50 [1] : vector<32x32xf32> to vector<32xf32>
    %100 = vector.shape_cast %99 : vector<32xf32> to vector<32x1xf32>
    %101 = tpu.reciprocal %100 {approx = true} : vector<32x1xf32> -> vector<32x1xf32>
    %102 = vector.broadcast %101 : vector<32x1xf32> to vector<32x32xf32>
    %103 = arith.mulf %98, %102 : vector<32x32xf32>
    %104 = arith.truncf %103 : vector<32x32xf32> to vector<32x32xbf16>
    %cst_51 = arith.constant dense<0.000000e+00> : vector<32x128xf32>
    %105 = tpu.matmul %104, %89, %cst_51 {dimension_numbers = #tpu.dot_dimension_numbers<[1], [0], [0], [1], [0, 0, 1, 1], [], []>} : vector<32x32xbf16>, vector<32x128xbf16>, vector<32x128xf32> -> vector<32x128xf32>
    %106 = arith.addf %78, %105 : vector<32x128xf32>
    %c32_i32_52 = arith.constant 32 : i32
    %107 = vector.broadcast %c32_i32_52 : i32 to vector<32x128xi32>
    %108 = arith.cmpi sge, %69, %107 : vector<32x128xi32>
    %c64_i32 = arith.constant 64 : i32
    %109 = vector.broadcast %c64_i32 : i32 to vector<32x128xi32>
    %110 = arith.cmpi slt, %69, %109 : vector<32x128xi32>
    %111 = arith.andi %108, %110 : vector<32x128xi1>
    %cst_53 = arith.constant 0.000000e+00 : f32
    %112 = vector.broadcast %cst_53 : f32 to vector<32x128xf32>
    %113 = arith.select %111, %75, %112 : vector<32x128xi1>, vector<32x128xf32>
    %114 = arith.truncf %113 : vector<32x128xf32> to vector<32x128xbf16>
    %cst_54 = arith.constant 0.000000e+00 : f32
    %115 = vector.broadcast %cst_54 : f32 to vector<32x128xf32>
    %116 = arith.select %111, %76, %115 : vector<32x128xi1>, vector<32x128xf32>
    %117 = arith.truncf %116 : vector<32x128xf32> to vector<32x128xbf16>
    %cst_55 = arith.constant dense<0.000000e+00> : vector<32x32xf32>
    %118 = tpu.matmul %77, %114, %cst_55 {dimension_numbers = #tpu.dot_dimension_numbers<[1], [1], [0], [0], [0, 0, 1, 0], [], []>} : vector<32x128xbf16>, vector<32x128xbf16>, vector<32x32xf32> -> vector<32x32xf32>
    %cst_56 = arith.constant 0.176776692 : f32
    %119 = vector.broadcast %cst_56 : f32 to vector<32x32xf32>
    %120 = arith.mulf %118, %119 : vector<32x32xf32>
    %121 = arith.addf %120, %68 : vector<32x32xf32>
    %cst_57 = arith.constant dense<0xFF800000> : vector<32xf32>
    %122 = vector.multi_reduction <maximumf>, %121, %cst_57 [1] : vector<32x32xf32> to vector<32xf32>
    %123 = vector.shape_cast %122 : vector<32xf32> to vector<32x1xf32>
    %124 = vector.broadcast %123 : vector<32x1xf32> to vector<32x32xf32>
    %125 = arith.subf %121, %124 : vector<32x32xf32>
    %126 = math.exp %125 : vector<32x32xf32>
    %cst_58 = arith.constant dense<0.000000e+00> : vector<32xf32>
    %127 = vector.multi_reduction <add>, %126, %cst_58 [1] : vector<32x32xf32> to vector<32xf32>
    %128 = vector.shape_cast %127 : vector<32xf32> to vector<32x1xf32>
    %129 = tpu.reciprocal %128 {approx = true} : vector<32x1xf32> -> vector<32x1xf32>
    %130 = vector.broadcast %129 : vector<32x1xf32> to vector<32x32xf32>
    %131 = arith.mulf %126, %130 : vector<32x32xf32>
    %132 = arith.truncf %131 : vector<32x32xf32> to vector<32x32xbf16>
    %cst_59 = arith.constant dense<0.000000e+00> : vector<32x128xf32>
    %133 = tpu.matmul %132, %117, %cst_59 {dimension_numbers = #tpu.dot_dimension_numbers<[1], [0], [0], [1], [0, 0, 1, 1], [], []>} : vector<32x32xbf16>, vector<32x128xbf16>, vector<32x128xf32> -> vector<32x128xf32>
    %134 = arith.addf %106, %133 : vector<32x128xf32>
    %c64_i32_60 = arith.constant 64 : i32
    %135 = vector.broadcast %c64_i32_60 : i32 to vector<32x128xi32>
    %136 = arith.cmpi sge, %69, %135 : vector<32x128xi32>
    %c96_i32 = arith.constant 96 : i32
    %137 = vector.broadcast %c96_i32 : i32 to vector<32x128xi32>
    %138 = arith.cmpi slt, %69, %137 : vector<32x128xi32>
    %139 = arith.andi %136, %138 : vector<32x128xi1>
    %cst_61 = arith.constant 0.000000e+00 : f32
    %140 = vector.broadcast %cst_61 : f32 to vector<32x128xf32>
    %141 = arith.select %139, %75, %140 : vector<32x128xi1>, vector<32x128xf32>
    %142 = arith.truncf %141 : vector<32x128xf32> to vector<32x128xbf16>
    %cst_62 = arith.constant 0.000000e+00 : f32
    %143 = vector.broadcast %cst_62 : f32 to vector<32x128xf32>
    %144 = arith.select %139, %76, %143 : vector<32x128xi1>, vector<32x128xf32>
    %145 = arith.truncf %144 : vector<32x128xf32> to vector<32x128xbf16>
    %cst_63 = arith.constant dense<0.000000e+00> : vector<32x32xf32>
    %146 = tpu.matmul %77, %142, %cst_63 {dimension_numbers = #tpu.dot_dimension_numbers<[1], [1], [0], [0], [0, 0, 1, 0], [], []>} : vector<32x128xbf16>, vector<32x128xbf16>, vector<32x32xf32> -> vector<32x32xf32>
    %cst_64 = arith.constant 0.176776692 : f32
    %147 = vector.broadcast %cst_64 : f32 to vector<32x32xf32>
    %148 = arith.mulf %146, %147 : vector<32x32xf32>
    %149 = arith.addf %148, %68 : vector<32x32xf32>
    %cst_65 = arith.constant dense<0xFF800000> : vector<32xf32>
    %150 = vector.multi_reduction <maximumf>, %149, %cst_65 [1] : vector<32x32xf32> to vector<32xf32>
    %151 = vector.shape_cast %150 : vector<32xf32> to vector<32x1xf32>
    %152 = vector.broadcast %151 : vector<32x1xf32> to vector<32x32xf32>
    %153 = arith.subf %149, %152 : vector<32x32xf32>
    %154 = math.exp %153 : vector<32x32xf32>
    %cst_66 = arith.constant dense<0.000000e+00> : vector<32xf32>
    %155 = vector.multi_reduction <add>, %154, %cst_66 [1] : vector<32x32xf32> to vector<32xf32>
    %156 = vector.shape_cast %155 : vector<32xf32> to vector<32x1xf32>
    %157 = tpu.reciprocal %156 {approx = true} : vector<32x1xf32> -> vector<32x1xf32>
    %158 = vector.broadcast %157 : vector<32x1xf32> to vector<32x32xf32>
    %159 = arith.mulf %154, %158 : vector<32x32xf32>
    %160 = arith.truncf %159 : vector<32x32xf32> to vector<32x32xbf16>
    %cst_67 = arith.constant dense<0.000000e+00> : vector<32x128xf32>
    %161 = tpu.matmul %160, %145, %cst_67 {dimension_numbers = #tpu.dot_dimension_numbers<[1], [0], [0], [1], [0, 0, 1, 1], [], []>} : vector<32x32xbf16>, vector<32x128xbf16>, vector<32x128xf32> -> vector<32x128xf32>
    %162 = arith.addf %134, %161 : vector<32x128xf32>
    %c96_i32_68 = arith.constant 96 : i32
    %163 = vector.broadcast %c96_i32_68 : i32 to vector<32x128xi32>
    %164 = arith.cmpi sge, %69, %163 : vector<32x128xi32>
    %c128_i32 = arith.constant 128 : i32
    %165 = vector.broadcast %c128_i32 : i32 to vector<32x128xi32>
    %166 = arith.cmpi slt, %69, %165 : vector<32x128xi32>
    %167 = arith.andi %164, %166 : vector<32x128xi1>
    %cst_69 = arith.constant 0.000000e+00 : f32
    %168 = vector.broadcast %cst_69 : f32 to vector<32x128xf32>
    %169 = arith.select %167, %75, %168 : vector<32x128xi1>, vector<32x128xf32>
    %170 = arith.truncf %169 : vector<32x128xf32> to vector<32x128xbf16>
    %cst_70 = arith.constant 0.000000e+00 : f32
    %171 = vector.broadcast %cst_70 : f32 to vector<32x128xf32>
    %172 = arith.select %167, %76, %171 : vector<32x128xi1>, vector<32x128xf32>
    %173 = arith.truncf %172 : vector<32x128xf32> to vector<32x128xbf16>
    %cst_71 = arith.constant dense<0.000000e+00> : vector<32x32xf32>
    %174 = tpu.matmul %77, %170, %cst_71 {dimension_numbers = #tpu.dot_dimension_numbers<[1], [1], [0], [0], [0, 0, 1, 0], [], []>} : vector<32x128xbf16>, vector<32x128xbf16>, vector<32x32xf32> -> vector<32x32xf32>
    %cst_72 = arith.constant 0.176776692 : f32
    %175 = vector.broadcast %cst_72 : f32 to vector<32x32xf32>
    %176 = arith.mulf %174, %175 : vector<32x32xf32>
    %177 = arith.addf %176, %68 : vector<32x32xf32>
    %cst_73 = arith.constant dense<0xFF800000> : vector<32xf32>
    %178 = vector.multi_reduction <maximumf>, %177, %cst_73 [1] : vector<32x32xf32> to vector<32xf32>
    %179 = vector.shape_cast %178 : vector<32xf32> to vector<32x1xf32>
    %180 = vector.broadcast %179 : vector<32x1xf32> to vector<32x32xf32>
    %181 = arith.subf %177, %180 : vector<32x32xf32>
    %182 = math.exp %181 : vector<32x32xf32>
    %cst_74 = arith.constant dense<0.000000e+00> : vector<32xf32>
    %183 = vector.multi_reduction <add>, %182, %cst_74 [1] : vector<32x32xf32> to vector<32xf32>
    %184 = vector.shape_cast %183 : vector<32xf32> to vector<32x1xf32>
    %185 = tpu.reciprocal %184 {approx = true} : vector<32x1xf32> -> vector<32x1xf32>
    %186 = vector.broadcast %185 : vector<32x1xf32> to vector<32x32xf32>
    %187 = arith.mulf %182, %186 : vector<32x32xf32>
    %188 = arith.truncf %187 : vector<32x32xf32> to vector<32x32xbf16>
    %cst_75 = arith.constant dense<0.000000e+00> : vector<32x128xf32>
    %189 = tpu.matmul %188, %173, %cst_75 {dimension_numbers = #tpu.dot_dimension_numbers<[1], [0], [0], [1], [0, 0, 1, 1], [], []>} : vector<32x32xbf16>, vector<32x128xbf16>, vector<32x128xf32> -> vector<32x128xf32>
    %190 = arith.addf %162, %189 : vector<32x128xf32>
    %191 = arith.truncf %190 : vector<32x128xf32> to vector<32x128xbf16>
    %c0_76 = arith.constant 0 : index
    %c0_77 = arith.constant 0 : index
    %c0_78 = arith.constant 0 : index
    %192 = vector.load %arg17[%c0_76, %c0_77, %c0_78] : memref<1x128x128xbf16, #tpu.memory_space<vmem>>, vector<1x128x128xbf16>
    %193 = vector.shape_cast %192 : vector<1x128x128xbf16> to vector<128x128xbf16>
    %cst_79 = arith.constant dense<0.000000e+00> : vector<32x128xf32>
    %194 = tpu.matmul %191, %193, %cst_79 {dimension_numbers = #tpu.dot_dimension_numbers<[1], [0], [0], [1], [0, 0, 1, 1], [], []>} : vector<32x128xbf16>, vector<128x128xbf16>, vector<32x128xf32> -> vector<32x128xf32>
    %195 = arith.addf %60, %194 : vector<32x128xf32>
    %c0_80 = arith.constant 0 : index
    %c0_81 = arith.constant 0 : index
    %c0_82 = arith.constant 0 : index
    %196 = vector.load %arg18[%c0_80, %c0_81, %c0_82] : memref<1x1x128xf32, #tpu.memory_space<vmem>>, vector<1x1x128xf32>
    %197 = vector.shape_cast %196 : vector<1x1x128xf32> to vector<1x128xf32>
    %c0_83 = arith.constant 0 : index
    %c0_84 = arith.constant 0 : index
    %c0_85 = arith.constant 0 : index
    %198 = vector.load %arg19[%c0_83, %c0_84, %c0_85] : memref<1x1x128xf32, #tpu.memory_space<vmem>>, vector<1x1x128xf32>
    %199 = vector.shape_cast %198 : vector<1x1x128xf32> to vector<1x128xf32>
    %cst_86 = arith.constant dense<0.000000e+00> : vector<32xf32>
    %200 = vector.multi_reduction <add>, %195, %cst_86 [1] : vector<32x128xf32> to vector<32xf32>
    %201 = vector.shape_cast %200 : vector<32xf32> to vector<32x1xf32>
    %cst_87 = arith.constant 1.280000e+02 : f32
    %202 = vector.broadcast %cst_87 : f32 to vector<32x1xf32>
    %203 = arith.divf %201, %202 : vector<32x1xf32>
    %204 = vector.broadcast %203 : vector<32x1xf32> to vector<32x128xf32>
    %205 = arith.subf %195, %204 : vector<32x128xf32>
    %206 = arith.mulf %205, %205 : vector<32x128xf32>
    %cst_88 = arith.constant dense<0.000000e+00> : vector<32xf32>
    %207 = vector.multi_reduction <add>, %206, %cst_88 [1] : vector<32x128xf32> to vector<32xf32>
    %208 = vector.shape_cast %207 : vector<32xf32> to vector<32x1xf32>
    %cst_89 = arith.constant 1.280000e+02 : f32
    %209 = vector.broadcast %cst_89 : f32 to vector<32x1xf32>
    %210 = arith.divf %208, %209 : vector<32x1xf32>
    %211 = vector.broadcast %203 : vector<32x1xf32> to vector<32x128xf32>
    %212 = arith.subf %195, %211 : vector<32x128xf32>
    %cst_90 = arith.constant 9.99999974E-6 : f32
    %213 = vector.broadcast %cst_90 : f32 to vector<32x1xf32>
    %214 = arith.addf %210, %213 : vector<32x1xf32>
    %215 = math.rsqrt %214 : vector<32x1xf32>
    %216 = vector.broadcast %215 : vector<32x1xf32> to vector<32x128xf32>
    %217 = arith.mulf %212, %216 : vector<32x128xf32>
    %218 = vector.broadcast %197 : vector<1x128xf32> to vector<32x128xf32>
    %219 = arith.mulf %217, %218 : vector<32x128xf32>
    %220 = vector.broadcast %199 : vector<1x128xf32> to vector<32x128xf32>
    %221 = arith.addf %219, %220 : vector<32x128xf32>
    %222 = arith.truncf %221 : vector<32x128xf32> to vector<32x128xbf16>
    %c0_91 = arith.constant 0 : index
    %c0_92 = arith.constant 0 : index
    %c0_93 = arith.constant 0 : index
    %223 = vector.load %arg20[%c0_91, %c0_92, %c0_93] : memref<1x128x256xbf16, #tpu.memory_space<vmem>>, vector<1x128x256xbf16>
    %224 = vector.shape_cast %223 : vector<1x128x256xbf16> to vector<128x256xbf16>
    %cst_94 = arith.constant dense<0.000000e+00> : vector<32x256xf32>
    %225 = tpu.matmul %222, %224, %cst_94 {dimension_numbers = #tpu.dot_dimension_numbers<[1], [0], [0], [1], [0, 0, 1, 1], [], []>} : vector<32x128xbf16>, vector<128x256xbf16>, vector<32x256xf32> -> vector<32x256xf32>
    %c0_95 = arith.constant 0 : index
    %c0_96 = arith.constant 0 : index
    %c0_97 = arith.constant 0 : index
    %226 = vector.load %arg21[%c0_95, %c0_96, %c0_97] : memref<1x1x256xf32, #tpu.memory_space<vmem>>, vector<1x1x256xf32>
    %227 = vector.shape_cast %226 : vector<1x1x256xf32> to vector<1x256xf32>
    %228 = vector.broadcast %227 : vector<1x256xf32> to vector<32x256xf32>
    %229 = arith.addf %225, %228 : vector<32x256xf32>
    %cst_98 = arith.constant 0.000000e+00 : f32
    %230 = vector.broadcast %cst_98 : f32 to vector<32x256xf32>
    %231 = arith.maximumf %229, %230 : vector<32x256xf32>
    %232 = arith.truncf %231 : vector<32x256xf32> to vector<32x256xbf16>
    %c0_99 = arith.constant 0 : index
    %c0_100 = arith.constant 0 : index
    %c0_101 = arith.constant 0 : index
    %233 = vector.load %arg22[%c0_99, %c0_100, %c0_101] : memref<1x256x128xbf16, #tpu.memory_space<vmem>>, vector<1x256x128xbf16>
    %234 = vector.shape_cast %233 : vector<1x256x128xbf16> to vector<256x128xbf16>
    %cst_102 = arith.constant dense<0.000000e+00> : vector<32x128xf32>
    %235 = tpu.matmul %232, %234, %cst_102 {dimension_numbers = #tpu.dot_dimension_numbers<[1], [0], [0], [1], [0, 0, 1, 1], [], []>} : vector<32x256xbf16>, vector<256x128xbf16>, vector<32x128xf32> -> vector<32x128xf32>
    %c0_103 = arith.constant 0 : index
    %c0_104 = arith.constant 0 : index
    %c0_105 = arith.constant 0 : index
    %236 = vector.load %arg23[%c0_103, %c0_104, %c0_105] : memref<1x1x128xf32, #tpu.memory_space<vmem>>, vector<1x1x128xf32>
    %237 = vector.shape_cast %236 : vector<1x1x128xf32> to vector<1x128xf32>
    %238 = vector.broadcast %237 : vector<1x128xf32> to vector<32x128xf32>
    %239 = arith.addf %235, %238 : vector<32x128xf32>
    %240 = arith.addf %221, %239 : vector<32x128xf32>
    %c0_106 = arith.constant 0 : index
    %c0_107 = arith.constant 0 : index
    %c0_108 = arith.constant 0 : index
    %241 = vector.load %arg24[%c0_106, %c0_107, %c0_108] : memref<1x1x128xf32, #tpu.memory_space<vmem>>, vector<1x1x128xf32>
    %242 = vector.shape_cast %241 : vector<1x1x128xf32> to vector<1x128xf32>
    %c0_109 = arith.constant 0 : index
    %c0_110 = arith.constant 0 : index
    %c0_111 = arith.constant 0 : index
    %243 = vector.load %arg25[%c0_109, %c0_110, %c0_111] : memref<1x1x128xf32, #tpu.memory_space<vmem>>, vector<1x1x128xf32>
    %244 = vector.shape_cast %243 : vector<1x1x128xf32> to vector<1x128xf32>
    %cst_112 = arith.constant dense<0.000000e+00> : vector<32xf32>
    %245 = vector.multi_reduction <add>, %240, %cst_112 [1] : vector<32x128xf32> to vector<32xf32>
    %246 = vector.shape_cast %245 : vector<32xf32> to vector<32x1xf32>
    %cst_113 = arith.constant 1.280000e+02 : f32
    %247 = vector.broadcast %cst_113 : f32 to vector<32x1xf32>
    %248 = arith.divf %246, %247 : vector<32x1xf32>
    %249 = vector.broadcast %248 : vector<32x1xf32> to vector<32x128xf32>
    %250 = arith.subf %240, %249 : vector<32x128xf32>
    %251 = arith.mulf %250, %250 : vector<32x128xf32>
    %cst_114 = arith.constant dense<0.000000e+00> : vector<32xf32>
    %252 = vector.multi_reduction <add>, %251, %cst_114 [1] : vector<32x128xf32> to vector<32xf32>
    %253 = vector.shape_cast %252 : vector<32xf32> to vector<32x1xf32>
    %cst_115 = arith.constant 1.280000e+02 : f32
    %254 = vector.broadcast %cst_115 : f32 to vector<32x1xf32>
    %255 = arith.divf %253, %254 : vector<32x1xf32>
    %256 = vector.broadcast %248 : vector<32x1xf32> to vector<32x128xf32>
    %257 = arith.subf %240, %256 : vector<32x128xf32>
    %cst_116 = arith.constant 9.99999974E-6 : f32
    %258 = vector.broadcast %cst_116 : f32 to vector<32x1xf32>
    %259 = arith.addf %255, %258 : vector<32x1xf32>
    %260 = math.rsqrt %259 : vector<32x1xf32>
    %261 = vector.broadcast %260 : vector<32x1xf32> to vector<32x128xf32>
    %262 = arith.mulf %257, %261 : vector<32x128xf32>
    %263 = vector.broadcast %242 : vector<1x128xf32> to vector<32x128xf32>
    %264 = arith.mulf %262, %263 : vector<32x128xf32>
    %265 = vector.broadcast %244 : vector<1x128xf32> to vector<32x128xf32>
    %266 = arith.addf %264, %265 : vector<32x128xf32>
    %267 = arith.truncf %266 : vector<32x128xf32> to vector<32x128xbf16>
    %c0_117 = arith.constant 0 : index
    %c0_118 = arith.constant 0 : index
    %268 = vector.load %arg26[%c0_117, %c0_118] : memref<128x128xbf16, #tpu.memory_space<vmem>>, vector<128x128xbf16>
    %cst_119 = arith.constant dense<0.000000e+00> : vector<32x128xf32>
    %269 = tpu.matmul %267, %268, %cst_119 {dimension_numbers = #tpu.dot_dimension_numbers<[1], [0], [0], [1], [0, 0, 1, 1], [], []>} : vector<32x128xbf16>, vector<128x128xbf16>, vector<32x128xf32> -> vector<32x128xf32>
    %c0_120 = arith.constant 0 : index
    %c0_121 = arith.constant 0 : index
    %270 = vector.load %arg27[%c0_120, %c0_121] : memref<1x128xf32, #tpu.memory_space<vmem>>, vector<1x128xf32>
    %271 = vector.broadcast %270 : vector<1x128xf32> to vector<32x128xf32>
    %272 = arith.addf %269, %271 : vector<32x128xf32>
    %c0_122 = arith.constant 0 : index
    %c0_123 = arith.constant 0 : index
    %273 = vector.load %arg28[%c0_122, %c0_123] : memref<32x128xf32, #tpu.memory_space<vmem>>, vector<32x128xf32>
    tpu.vector_store %arg28[%c0_122, %c0_123], %272 {strides = array<i32>} : memref<32x128xf32, #tpu.memory_space<vmem>>, vector<32x128xf32>,
    return
  }
}

</mosaic_0001>

<llo_original>
// kernel: bead_picker_forward.1
$region0: #{bead_picker_forward.1}
  #allocation0 [shape = 'u32[]', space=smem, size = 0x4, offset = 0x4, fixed_abs, tag = 'smem constant byte address 0x4 - core index']
  #allocation1 [shape = 'u32[72,128]{1,0:T(1,128)}', space=vmem, size = 0x9000, scoped, tag = 'internal scratch']
  %s0 = inlined_call_operand.vmem [shape: s32[32,1], index: 0, kind: input, shape index: {}]
  %s1 = inlined_call_operand.vmem [shape: s32[32,1], index: 1, kind: input, shape index: {}]
  %s2 = inlined_call_operand.vmem [shape: f32[32,8], index: 2, kind: input, shape index: {}]
  %s3 = inlined_call_operand.vmem [shape: f32[32,1], index: 3, kind: input, shape index: {}]
  %s4 = inlined_call_operand.vmem [shape: f32[32,1], index: 4, kind: input, shape index: {}]
  %s5 = inlined_call_operand.vmem [shape: f32[32,1], index: 5, kind: input, shape index: {}]
  %s6 = inlined_call_operand.vmem [shape: f32[32,1], index: 6, kind: input, shape index: {}]
  %s7 = inlined_call_operand.vmem [shape: s32[32,1], index: 7, kind: input, shape index: {}]
  %s8 = inlined_call_operand.vmem [shape: s32[1,32], index: 8, kind: input, shape index: {}]
  %s9 = inlined_call_operand.vmem [shape: f32[4,128], index: 9, kind: input, shape index: {}]
  %s10 = inlined_call_operand.vmem [shape: f32[1,128], index: 10, kind: input, shape index: {}]
  %s11 = inlined_call_operand.vmem [shape: bf16[8,128], index: 11, kind: input, shape index: {}]
  %s12 = inlined_call_operand.vmem [shape: bf16[8,128], index: 12, kind: input, shape index: {}]
  %s13 = inlined_call_operand.vmem [shape: bf16[8,128], index: 13, kind: input, shape index: {}]
  %s14 = inlined_call_operand.vmem [shape: bf16[128,128], index: 14, kind: input, shape index: {}]
  %s15 = inlined_call_operand.vmem [shape: f32[1,128], index: 15, kind: input, shape index: {}]
  %s16 = inlined_call_operand.hbm [shape: bf16[1,128,384], index: 16, kind: input, shape index: {}]
  %s17 = inlined_call_operand.hbm [shape: bf16[1,128,128], index: 17, kind: input, shape index: {}]
  %s18 = inlined_call_operand.vmem [shape: f32[1,1,128], index: 18, kind: input, shape index: {}]
  %s19 = inlined_call_operand.vmem [shape: f32[1,1,128], index: 19, kind: input, shape index: {}]
  %s20 = inlined_call_operand.vmem [shape: bf16[1,128,256], index: 20, kind: input, shape index: {}]
  %s21 = inlined_call_operand.vmem [shape: f32[1,1,256], index: 21, kind: input, shape index: {}]
  %s22 = inlined_call_operand.hbm [shape: bf16[1,256,128], index: 22, kind: input, shape index: {}]
  %s23 = inlined_call_operand.vmem [shape: f32[1,1,128], index: 23, kind: input, shape index: {}]
  %s24 = inlined_call_operand.vmem [shape: f32[1,1,128], index: 24, kind: input, shape index: {}]
  %s25 = inlined_call_operand.vmem [shape: f32[1,1,128], index: 25, kind: input, shape index: {}]
  %s26 = inlined_call_operand.hbm [shape: bf16[128,128], index: 26, kind: input, shape index: {}]
  %s27 = inlined_call_operand.vmem [shape: f32[1,128], index: 27, kind: input, shape index: {}]
  %s28 = inlined_call_operand.vmem [shape: f32[32,128], index: 28, kind: output, shape index: {}]
  %s29 = sld [smem:[#allocation0]]
  $region138: #{bead_picker_forward.1} parent=0
    _
  %s31 = ssub.s32 1, %s29
  %s32 = scalar_select 0, %s31, %s29
  $region1: #{bead_picker_forward.1} parent=0
    #allocation2 [shape = 'u8[98304]{0}', space=vmem, size = 0x18000, scoped, tag = 'input window, operand 16, single buffered']
    #allocation3 [shape = 's32[1]{0}', space=sflag, size = 0x4, scoped, tag = 'scoped memory for bead_picker_forward.1']
    #allocation4 [shape = 'u8[32768]{0}', space=vmem, size = 0x8000, scoped, tag = 'input window, operand 17, single buffered']
    #allocation5 [shape = 's32[1]{0}', space=sflag, size = 0x4, scoped, tag = 'scoped memory for bead_picker_forward.1']
    #allocation6 [shape = 'u8[65536]{0}', space=vmem, size = 0x10000, scoped, tag = 'input window, operand 22, single buffered']
    #allocation7 [shape = 'u8[32768]{0}', space=vmem, size = 0x8000, scoped, tag = 'input window, operand 26, single buffered']
    #allocation8 [shape = 's32[1]{0}', space=sflag, size = 0x4, scoped, tag = 'scoped memory for bead_picker_forward.1']
    %33 = vsyncpa [#allocation3], 0
    %34 = vsyncpa [#allocation5], 0
    %35 = vsyncpa [#allocation8], 0
    // Predicated region
    $region2: #{bead_picker_forward.1} parent=1 // pred_check
      _
    $region3: #{bead_picker_forward.1} parent=1 // pred_check_branch
      %37 = sbr.rel (0) target = $region5
    $region4: #{bead_picker_forward.1} parent=1 // pred_region
      _
    $region5: #{bead_picker_forward.1} parent=1 // pred_fallthru
      _
    // Predicated region
    $region6: #{bead_picker_forward.1} parent=1 // pred_check
      _
    $region7: #{bead_picker_forward.1} parent=1 // pred_check_branch
      %39 = sbr.rel (0) target = $region9
    $region8: #{bead_picker_forward.1} parent=1 // pred_region
      _
    $region9: #{bead_picker_forward.1} parent=1 // pred_fallthru
      _
    // Predicated region
    $region10: #{bead_picker_forward.1} parent=1 // pred_check
      _
    $region11: #{bead_picker_forward.1} parent=1 // pred_check_branch
      %41 = sbr.rel (0) target = $region13
    $region12: #{bead_picker_forward.1} parent=1 // pred_region
      _
    $region13: #{bead_picker_forward.1} parent=1 // pred_fallthru
      _
    // Predicated region
    $region14: #{bead_picker_forward.1} parent=1 // pred_check
      _
    $region15: #{bead_picker_forward.1} parent=1 // pred_check_branch
      %43 = sbr.rel (0) target = $region17
    $region16: #{bead_picker_forward.1} parent=1 // pred_region
      _
    $region17: #{bead_picker_forward.1} parent=1 // pred_fallthru
      _
    // Predicated region
    $region18: #{bead_picker_forward.1} parent=1 // pred_check
      _
    $region19: #{bead_picker_forward.1} parent=1 // pred_check_branch
      %45 = sbr.rel (0) target = $region21
    $region20: #{bead_picker_forward.1} parent=1 // pred_region
      _
    $region21: #{bead_picker_forward.1} parent=1 // pred_fallthru
      _
    // Predicated region
    $region22: #{bead_picker_forward.1} parent=1 // pred_check
      _
    $region23: #{bead_picker_forward.1} parent=1 // pred_check_branch
      %47 = sbr.rel (0) target = $region25
    $region24: #{bead_picker_forward.1} parent=1 // pred_region
      _
    $region25: #{bead_picker_forward.1} parent=1 // pred_fallthru
      _
    // Predicated region
    $region26: #{bead_picker_forward.1} parent=1 // pred_check
      _
    $region27: #{bead_picker_forward.1} parent=1 // pred_check_branch
      %49 = sbr.rel (0) target = $region29
    $region28: #{bead_picker_forward.1} parent=1 // pred_region
      _
    $region29: #{bead_picker_forward.1} parent=1 // pred_fallthru
      _
    // Predicated region
    $region30: #{bead_picker_forward.1} parent=1 // pred_check
      _
    $region31: #{bead_picker_forward.1} parent=1 // pred_check_branch
      %51 = sbr.rel (0) target = $region33
    $region32: #{bead_picker_forward.1} parent=1 // pred_region
      _
    $region33: #{bead_picker_forward.1} parent=1 // pred_fallthru
      _
    // Predicated region
    $region34: #{bead_picker_forward.1} parent=1 // pred_check
      _
    $region35: #{bead_picker_forward.1} parent=1 // pred_check_branch
      %53 = sbr.rel (0) target = $region37
    $region36: #{bead_picker_forward.1} parent=1 // pred_region
      _
    $region37: #{bead_picker_forward.1} parent=1 // pred_fallthru
      _
    // Predicated region
    $region38: #{bead_picker_forward.1} parent=1 // pred_check
      _
    $region39: #{bead_picker_forward.1} parent=1 // pred_check_branch
      %55 = sbr.rel (0) target = $region41
    $region40: #{bead_picker_forward.1} parent=1 // pred_region
      _
    $region41: #{bead_picker_forward.1} parent=1 // pred_fallthru
      _
    // Predicated region
    $region42: #{bead_picker_forward.1} parent=1 // pred_check
      _
    $region43: #{bead_picker_forward.1} parent=1 // pred_check_branch
      %57 = sbr.rel (0) target = $region45
    $region44: #{bead_picker_forward.1} parent=1 // pred_region
      _
    $region45: #{bead_picker_forward.1} parent=1 // pred_fallthru
      _
    // Predicated region
    $region46: #{bead_picker_forward.1} parent=1 // pred_check
      _
    $region47: #{bead_picker_forward.1} parent=1 // pred_check_branch
      %59 = sbr.rel (0) target = $region49
    $region48: #{bead_picker_forward.1} parent=1 // pred_region
      _
    $region49: #{bead_picker_forward.1} parent=1 // pred_fallthru
      _
    // Predicated region
    $region50: #{bead_picker_forward.1} parent=1 // pred_check
      _
    $region51: #{bead_picker_forward.1} parent=1 // pred_check_branch
      %61 = sbr.rel (0) target = $region53
    $region52: #{bead_picker_forward.1} parent=1 // pred_region
      _
    $region53: #{bead_picker_forward.1} parent=1 // pred_fallthru
      _
    // Predicated region
    $region54: #{bead_picker_forward.1} parent=1 // pred_check
      _
    $region55: #{bead_picker_forward.1} parent=1 // pred_check_branch
      %63 = sbr.rel (0) target = $region57
    $region56: #{bead_picker_forward.1} parent=1 // pred_region
      _
    $region57: #{bead_picker_forward.1} parent=1 // pred_fallthru
      _
    // Predicated region
    $region58: #{bead_picker_forward.1} parent=1 // pred_check
      _
    $region59: #{bead_picker_forward.1} parent=1 // pred_check_branch
      %65 = sbr.rel (0) target = $region61
    $region60: #{bead_picker_forward.1} parent=1 // pred_region
      _
    $region61: #{bead_picker_forward.1} parent=1 // pred_fallthru
      _
    // Predicated region
    $region62: #{bead_picker_forward.1} parent=1 // pred_check
      _
    $region63: #{bead_picker_forward.1} parent=1 // pred_check_branch
      %67 = sbr.rel (0) target = $region65
    $region64: #{bead_picker_forward.1} parent=1 // pred_region
      _
    $region65: #{bead_picker_forward.1} parent=1 // pred_fallthru
      _
    // Predicated region
    $region66: #{bead_picker_forward.1} parent=1 // pred_check
      _
    $region67: #{bead_picker_forward.1} parent=1 // pred_check_branch
      %69 = sbr.rel (0) target = $region69
    $region68: #{bead_picker_forward.1} parent=1 // pred_region
      %71 = vsyncadd [#allocation3], 0
      %s72 = sshll.u32 %s16, 4
      %s73 = int_to_ptr.hbm [resolvable:$true] %s72
      %s74 = sshll.u32 [#allocation2], 4
      %s75 = int_to_ptr.vmem [resolvable:$true] %s74
      %80 = dma.hbm_to_vmem [thread:$0]  %s73, 3072, %s75, [#allocation3], 192, 192, 12
    $region69: #{bead_picker_forward.1} parent=1 // pred_fallthru
      _
    // Predicated region
    $region70: #{bead_picker_forward.1} parent=1 // pred_check
      _
    $region71: #{bead_picker_forward.1} parent=1 // pred_check_branch
      %82 = sbr.rel (0) target = $region73
    $region72: #{bead_picker_forward.1} parent=1 // pred_region
      %84 = vsyncadd [#allocation5], 0
      %s85 = sshll.u32 %s17, 4
      %s86 = int_to_ptr.hbm [resolvable:$true] %s85
      %s87 = sshll.u32 [#allocation4], 4
      %s88 = int_to_ptr.vmem [resolvable:$true] %s87
      %93 = dma.hbm_to_vmem [thread:$0]  %s86, 1024, %s88, [#allocation5], 64, 64, 4
    $region73: #{bead_picker_forward.1} parent=1 // pred_fallthru
      _
    // Predicated region
    $region74: #{bead_picker_forward.1} parent=1 // pred_check
      _
    $region75: #{bead_picker_forward.1} parent=1 // pred_check_branch
      %95 = sbr.rel (0) target = $region77
    $region76: #{bead_picker_forward.1} parent=1 // pred_region
      _
    $region77: #{bead_picker_forward.1} parent=1 // pred_fallthru
      _
    // Predicated region
    $region78: #{bead_picker_forward.1} parent=1 // pred_check
      _
    $region79: #{bead_picker_forward.1} parent=1 // pred_check_branch
      %97 = sbr.rel (0) target = $region81
    $region80: #{bead_picker_forward.1} parent=1 // pred_region
      _
    $region81: #{bead_picker_forward.1} parent=1 // pred_fallthru
      _
    // Predicated region
    $region82: #{bead_picker_forward.1} parent=1 // pred_check
      _
    $region83: #{bead_picker_forward.1} parent=1 // pred_check_branch
      %99 = sbr.rel (0) target = $region85
    $region84: #{bead_picker_forward.1} parent=1 // pred_region
      _
    $region85: #{bead_picker_forward.1} parent=1 // pred_fallthru
      _
    // Predicated region
    $region86: #{bead_picker_forward.1} parent=1 // pred_check
      _
    $region87: #{bead_picker_forward.1} parent=1 // pred_check_branch
      %101 = sbr.rel (0) target = $region89
    $region88: #{bead_picker_forward.1} parent=1 // pred_region
      _
    $region89: #{bead_picker_forward.1} parent=1 // pred_fallthru
      _
    // Predicated region
    $region90: #{bead_picker_forward.1} parent=1 // pred_check
      _
    $region91: #{bead_picker_forward.1} parent=1 // pred_check_branch
      %103 = sbr.rel (0) target = $region93
    $region92: #{bead_picker_forward.1} parent=1 // pred_region
      %105 = vsyncadd [#allocation5], 0
      %s106 = sshll.u32 %s22, 4
      %s107 = int_to_ptr.hbm [resolvable:$true] %s106
      %s108 = sshll.u32 [#allocation6], 4
      %s109 = int_to_ptr.vmem [resolvable:$true] %s108
      %114 = dma.hbm_to_vmem [thread:$0]  %s107, 2048, %s109, [#allocation5], 64, 64, 4
    $region93: #{bead_picker_forward.1} parent=1 // pred_fallthru
      _
    // Predicated region
    $region94: #{bead_picker_forward.1} parent=1 // pred_check
      _
    $region95: #{bead_picker_forward.1} parent=1 // pred_check_branch
      %116 = sbr.rel (0) target = $region97
    $region96: #{bead_picker_forward.1} parent=1 // pred_region
      _
    $region97: #{bead_picker_forward.1} parent=1 // pred_fallthru
      _
    // Predicated region
    $region98: #{bead_picker_forward.1} parent=1 // pred_check
      _
    $region99: #{bead_picker_forward.1} parent=1 // pred_check_branch
      %118 = sbr.rel (0) target = $region101
    $region100: #{bead_picker_forward.1} parent=1 // pred_region
      _
    $region101: #{bead_picker_forward.1} parent=1 // pred_fallthru
      _
    // Predicated region
    $region102: #{bead_picker_forward.1} parent=1 // pred_check
      _
    $region103: #{bead_picker_forward.1} parent=1 // pred_check_branch
      %120 = sbr.rel (0) target = $region105
    $region104: #{bead_picker_forward.1} parent=1 // pred_region
      _
    $region105: #{bead_picker_forward.1} parent=1 // pred_fallthru
      _
    // Predicated region
    $region106: #{bead_picker_forward.1} parent=1 // pred_check
      _
    $region107: #{bead_picker_forward.1} parent=1 // pred_check_branch
      %122 = sbr.rel (0) target = $region109
    $region108: #{bead_picker_forward.1} parent=1 // pred_region
      %124 = vsyncadd [#allocation8], 0
      %s125 = sshll.u32 %s26, 4
      %s126 = int_to_ptr.hbm [resolvable:$true] %s125
      %s127 = sshll.u32 [#allocation7], 4
      %s128 = int_to_ptr.vmem [resolvable:$true] %s127
      %133 = dma.hbm_to_vmem [thread:$0]  %s126, 1024, %s128, [#allocation8], 64, 64, 4
    $region109: #{bead_picker_forward.1} parent=1 // pred_fallthru
      _
    // Predicated region
    $region110: #{bead_picker_forward.1} parent=1 // pred_check
      _
    $region111: #{bead_picker_forward.1} parent=1 // pred_check_branch
      %135 = sbr.rel (0) target = $region113
    $region112: #{bead_picker_forward.1} parent=1 // pred_region
      _
    $region113: #{bead_picker_forward.1} parent=1 // pred_fallthru
      _
    // Predicated region
    $region114: #{bead_picker_forward.1} parent=1 // pred_check
      _
    $region115: #{bead_picker_forward.1} parent=1 // pred_check_branch
      %137 = sbr.rel (0) target = $region117
    $region116: #{bead_picker_forward.1} parent=1 // pred_region
      %139 = dma.done [#allocation3], 3072
    $region117: #{bead_picker_forward.1} parent=1 // pred_fallthru
      _
    // Predicated region
    $region118: #{bead_picker_forward.1} parent=1 // pred_check
      _
    $region119: #{bead_picker_forward.1} parent=1 // pred_check_branch
      %141 = sbr.rel (0) target = $region121
    $region120: #{bead_picker_forward.1} parent=1 // pred_region
      %143 = dma.done [#allocation5], 1024
    $region121: #{bead_picker_forward.1} parent=1 // pred_fallthru
      _
    // Predicated region
    $region122: #{bead_picker_forward.1} parent=1 // pred_check
      _
    $region123: #{bead_picker_forward.1} parent=1 // pred_check_branch
      %145 = sbr.rel (0) target = $region125
    $region124: #{bead_picker_forward.1} parent=1 // pred_region
      %147 = dma.done [#allocation5], 2048
    $region125: #{bead_picker_forward.1} parent=1 // pred_fallthru
      _
    // Predicated region
    $region126: #{bead_picker_forward.1} parent=1 // pred_check
      _
    $region127: #{bead_picker_forward.1} parent=1 // pred_check_branch
      %149 = sbr.rel (0) target = $region129
    $region128: #{bead_picker_forward.1} parent=1 // pred_region
      %151 = dma.done [#allocation8], 1024
    $region129: #{bead_picker_forward.1} parent=1 // pred_fallthru
      _
    %v153 = vlaneseq
    %v154 = vand.u32 %v153, 127
    %v155 = vld [vmem:[%s0] sm:$0xff]
    %v156 = vld [vmem:[%s0 + $0x8] sm:$0xff]
    %v157 = vld [vmem:[%s0 + $0x10] sm:$0xff]
    %v158 = vld [vmem:[%s0 + $0x18] sm:$0xff]
    %159 = vset.pattern.permute.xlu0 0
    %160 = vperm.xlu0 %159, %v155
    %v161 = vpop.permute.xlu0 %160
    %162 = vset.pattern.permute.xlu0 0
    %163 = vperm.xlu0 %162, %v156
    %v164 = vpop.permute.xlu0 %163
    %165 = vset.pattern.permute.xlu0 0
    %166 = vperm.xlu0 %165, %v157
    %v167 = vpop.permute.xlu0 %166
    %168 = vset.pattern.permute.xlu0 0
    %169 = vperm.xlu0 %168, %v158
    %v170 = vpop.permute.xlu0 %169
    %vm171 = vcmp.eq.s32.totalorder %v154, %v161
    %vm172 = vcmp.eq.s32.totalorder %v154, %v164
    %vm173 = vcmp.eq.s32.totalorder %v154, %v167
    %vm174 = vcmp.eq.s32.totalorder %v154, %v170
    %v175 = vsel %vm171, 1.0, 0.0
    %v176 = vsel %vm172, 1.0, 0.0
    %v177 = vsel %vm173, 1.0, 0.0
    %v178 = vsel %vm174, 1.0, 0.0
    %v179 = vpack.c.bf16 %v176, %v175
    %v180 = vpack.c.bf16 %v178, %v177
    %v181 = vld [vmem:[%s1] sm:$0xff]
    %v182 = vld [vmem:[%s1 + $0x8] sm:$0xff]
    %v183 = vld [vmem:[%s1 + $0x10] sm:$0xff]
    %v184 = vld [vmem:[%s1 + $0x18] sm:$0xff]
    %185 = vset.pattern.permute.xlu0 0
    %186 = vperm.xlu0 %185, %v181
    %v187 = vpop.permute.xlu0 %186
    %188 = vset.pattern.permute.xlu0 0
    %189 = vperm.xlu0 %188, %v182
    %v190 = vpop.permute.xlu0 %189
    %191 = vset.pattern.permute.xlu0 0
    %192 = vperm.xlu0 %191, %v183
    %v193 = vpop.permute.xlu0 %192
    %194 = vset.pattern.permute.xlu0 0
    %195 = vperm.xlu0 %194, %v184
    %v196 = vpop.permute.xlu0 %195
    %vm197 = vcmp.eq.s32.totalorder %v154, %v187
    %vm198 = vcmp.eq.s32.totalorder %v154, %v190
    %vm199 = vcmp.eq.s32.totalorder %v154, %v193
    %vm200 = vcmp.eq.s32.totalorder %v154, %v196
    %v201 = vsel %vm197, 1.0, 0.0
    %v202 = vsel %vm198, 1.0, 0.0
    %v203 = vsel %vm199, 1.0, 0.0
    %v204 = vsel %vm200, 1.0, 0.0
    %v205 = vpack.c.bf16 %v202, %v201
    %v206 = vpack.c.bf16 %v204, %v203
    %v207 = vld [vmem:[%s9] sm:$0xf]
    %v208 = vld [vmem:[%s10] sm:$0x1]
    %v209 = vld [vmem:[%s3] sm:$0xff]
    %v210 = vld [vmem:[%s3 + $0x8] sm:$0xff]
    %v211 = vld [vmem:[%s3 + $0x10] sm:$0xff]
    %v212 = vld [vmem:[%s3 + $0x18] sm:$0xff]
    %214 = vset.pattern.permute.xlu0 0
    %215 = vperm.xlu0 %214, %v209
    %v216 = vpop.permute.xlu0 %215
    %219 = vset.pattern.permute.xlu0 0
    %220 = vperm.xlu0 %219, %v210
    %v221 = vpop.permute.xlu0 %220
    %224 = vset.pattern.permute.xlu0 0
    %225 = vperm.xlu0 %224, %v211
    %v226 = vpop.permute.xlu0 %225
    %229 = vset.pattern.permute.xlu0 0
    %230 = vperm.xlu0 %229, %v212
    %v231 = vpop.permute.xlu0 %230
    %v233 = vperm.slane %v207, 0
    %v234 = vmul.f32 %v216, %v233
    %v235 = vmul.f32 %v221, %v233
    %v236 = vmul.f32 %v226, %v233
    %v237 = vmul.f32 %v231, %v233
    %v239 = vperm.slane %v208, 0
    %v241 = vadd.f32 %v239, %v234
    %v242 = vadd.f32 %v239, %v235
    %v243 = vadd.f32 %v239, %v236
    %v244 = vadd.f32 %v239, %v237
    %v245 = vld [vmem:[%s4] sm:$0xff]
    %v246 = vld [vmem:[%s4 + $0x8] sm:$0xff]
    %v247 = vld [vmem:[%s4 + $0x10] sm:$0xff]
    %v248 = vld [vmem:[%s4 + $0x18] sm:$0xff]
    %250 = vset.pattern.permute.xlu0 0
    %251 = vperm.xlu0 %250, %v245
    %v252 = vpop.permute.xlu0 %251
    %255 = vset.pattern.permute.xlu0 0
    %256 = vperm.xlu0 %255, %v246
    %v257 = vpop.permute.xlu0 %256
    %260 = vset.pattern.permute.xlu0 0
    %261 = vperm.xlu0 %260, %v247
    %v262 = vpop.permute.xlu0 %261
    %265 = vset.pattern.permute.xlu0 0
    %266 = vperm.xlu0 %265, %v248
    %v267 = vpop.permute.xlu0 %266
    %v269 = vperm.slane %v207, 1
    %v270 = vmul.f32 %v252, %v269
    %v271 = vmul.f32 %v257, %v269
    %v272 = vmul.f32 %v262, %v269
    %v273 = vmul.f32 %v267, %v269
    %v274 = vadd.f32 %v241, %v270
    %v275 = vadd.f32 %v242, %v271
    %v276 = vadd.f32 %v243, %v272
    %v277 = vadd.f32 %v244, %v273
    %v278 = vld [vmem:[%s5] sm:$0xff]
    %v279 = vld [vmem:[%s5 + $0x8] sm:$0xff]
    %v280 = vld [vmem:[%s5 + $0x10] sm:$0xff]
    %v281 = vld [vmem:[%s5 + $0x18] sm:$0xff]
    %283 = vset.pattern.permute.xlu0 0
    %284 = vperm.xlu0 %283, %v278
    %v285 = vpop.permute.xlu0 %284
    %288 = vset.pattern.permute.xlu0 0
    %289 = vperm.xlu0 %288, %v279
    %v290 = vpop.permute.xlu0 %289
    %293 = vset.pattern.permute.xlu0 0
    %294 = vperm.xlu0 %293, %v280
    %v295 = vpop.permute.xlu0 %294
    %298 = vset.pattern.permute.xlu0 0
    %299 = vperm.xlu0 %298, %v281
    %v300 = vpop.permute.xlu0 %299
    %v302 = vperm.slane %v207, 2
    %v303 = vmul.f32 %v285, %v302
    %v304 = vmul.f32 %v290, %v302
    %v305 = vmul.f32 %v295, %v302
    %v306 = vmul.f32 %v300, %v302
    %v307 = vadd.f32 %v274, %v303
    %v308 = vadd.f32 %v275, %v304
    %v309 = vadd.f32 %v276, %v305
    %v310 = vadd.f32 %v277, %v306
    %v311 = vld [vmem:[%s6] sm:$0xff]
    %v312 = vld [vmem:[%s6 + $0x8] sm:$0xff]
    %v313 = vld [vmem:[%s6 + $0x10] sm:$0xff]
    %v314 = vld [vmem:[%s6 + $0x18] sm:$0xff]
    %316 = vset.pattern.permute.xlu0 0
    %317 = vperm.xlu0 %316, %v311
    %v318 = vpop.permute.xlu0 %317
    %321 = vset.pattern.permute.xlu0 0
    %322 = vperm.xlu0 %321, %v312
    %v323 = vpop.permute.xlu0 %322
    %326 = vset.pattern.permute.xlu0 0
    %327 = vperm.xlu0 %326, %v313
    %v328 = vpop.permute.xlu0 %327
    %331 = vset.pattern.permute.xlu0 0
    %332 = vperm.xlu0 %331, %v314
    %v333 = vpop.permute.xlu0 %332
    %v335 = vperm.slane %v207, 3
    %v336 = vmul.f32 %v318, %v335
    %v337 = vmul.f32 %v323, %v335
    %v338 = vmul.f32 %v328, %v335
    %v339 = vmul.f32 %v333, %v335
    %v340 = vadd.f32 %v307, %v336
    %v341 = vadd.f32 %v308, %v337
    %v342 = vadd.f32 %v309, %v338
    %v343 = vadd.f32 %v310, %v339
    %v344 = vand.u32 2147483647, %v340
    %vm345 = vcmp.le.f32.partialorder %v344, 0.7853982
    %vm346 = vcmp.lt.s32.totalorder %v340, 0
    %v347 = vand.u32 %v340, 2139095040
    %v348 = vshrl.u32 %v347, 23
    %v349 = vsub.s32 %v348, 127
    %v350 = vand.u32 2147483647, %v340
    %v351 = vand.u32 %v350, 8388607
    %v352 = vor.u32 %v351, 8388608
    %v353 = vsub.s32 0, %v352
    %v354 = vadd.s32 %v349, 1
    %vm355 = vcmp.gt.s32.totalorder %v354, 0
    %v356 = vsel %vm355, %v354, 0
    %v357 = vshrl.u32 %v356, 5
    %v358 = vand.u32 %v356, 31
    %v359 = vsub.s32 32, %v358
    %v360 = vshrl.u32 683565275, %v359
    %v361 = vshll.u32 683565275, %v358
    %v362 = vshrl.u32 2475754826, %v359
    %v363 = vor.u32 %v361, %v362
    %v364 = vshll.u32 2475754826, %v358
    %v365 = vshrl.u32 2131351028, %v359
    %v366 = vor.u32 %v364, %v365
    %v367 = vshll.u32 2131351028, %v358
    %v368 = vshrl.u32 2102212464, %v359
    %v369 = vor.u32 %v367, %v368
    %v370 = vshll.u32 2102212464, %v358
    %v371 = vshrl.u32 920167782, %v359
    %v372 = vor.u32 %v370, %v371
    %v373 = vshll.u32 920167782, %v358
    %v374 = vshrl.u32 1326507024, %v359
    %v375 = vor.u32 %v373, %v374
    %vm376 = vcmp.lt.s32.totalorder %v357, 1
    %vm377 = vcmp.lt.s32.totalorder %v357, 2
    %vm378 = vcmp.lt.s32.totalorder %v357, 3
    %vm379 = vcmp.lt.s32.totalorder %v357, 4
    %v380 = vsel %vm376, %v360, %v363
    %v381 = vsel %vm379, %v369, 2102212464
    %v382 = vsel %vm378, %v366, %v381
    %v383 = vsel %vm377, %v380, %v382
    %v384 = vsel %vm376, %v363, %v366
    %v385 = vsel %vm379, %v372, 920167782
    %v386 = vsel %vm378, %v369, %v385
    %v387 = vsel %vm377, %v384, %v386
    %v388 = vsel %vm376, %v366, %v369
    %v389 = vsel %vm379, %v375, 1326507024
    %v390 = vsel %vm378, %v372, %v389
    %v391 = vsel %vm377, %v388, %v390
    %v392 = vshll.u32 %v352, 8
    %v393 = vand.u32 %v392, 65535
    %v394 = vshrl.u32 %v392, 16
    %v395 = vand.u32 %v391, 65535
    %v396 = vshrl.u32 %v391, 16
    %v397 = vmul.u32 %v393, %v395
    %v398 = vmul.u32 %v393, %v396
    %v399 = vmul.u32 %v394, %v395
    %v400 = vmul.u32 %v394, %v396
    %v401 = vshll.u32 %v398, 16
    %v402 = vshrl.u32 %v398, 16
    %v403 = vshll.u32 %v399, 16
    %v404 = vshrl.u32 %v399, 16
    %vm405 = vc.u32 %v397, %v401
    %v406 = vsel %vm405, 1, 0
    %v407 = vadd.s32 %v397, %v401
    %v408 = vadd.s32 %v400, %v406
    %vm409 = vc.u32 %v407, %v403
    %v410 = vsel %vm409, 1, 0
    %v411 = vadd.s32 %v407, %v403
    %v412 = vadd.s32 %v408, %v410
    %v413 = vadd.s32 %v412, %v402
    %v414 = vadd.s32 %v413, %v404
    %v415 = vand.u32 %v392, 65535
    %v416 = vshrl.u32 %v392, 16
    %v417 = vand.u32 %v387, 65535
    %v418 = vshrl.u32 %v387, 16
    %v419 = vmul.u32 %v415, %v417
    %v420 = vmul.u32 %v415, %v418
    %v421 = vmul.u32 %v416, %v417
    %v422 = vmul.u32 %v416, %v418
    %v423 = vshll.u32 %v420, 16
    %v424 = vshrl.u32 %v420, 16
    %v425 = vshll.u32 %v421, 16
    %v426 = vshrl.u32 %v421, 16
    %vm427 = vc.u32 %v419, %v423
    %v428 = vsel %vm427, 1, 0
    %v429 = vadd.s32 %v419, %v423
    %v430 = vadd.s32 %v422, %v428
    %vm431 = vc.u32 %v429, %v425
    %v432 = vsel %vm431, 1, 0
    %v433 = vadd.s32 %v429, %v425
    %v434 = vadd.s32 %v430, %v432
    %v435 = vadd.s32 %v434, %v424
    %v436 = vadd.s32 %v435, %v426
    %v437 = vmul.u32 %v392, %v383
    %v438 = vadd.s32 %v414, %v433
    %vm439 = vc.u32 %v414, %v433
    %v440 = vadd.s32 %v436, 1
    %v441 = vsel %vm439, %v440, %v436
    %v442 = vadd.s32 %v437, %v441
    %v443 = vadd.s32 %v442, 536870912
    %v444 = vshrl.u32 %v443, 30
    %v445 = vshll.u32 %v444, 30
    %v446 = vsub.s32 %v442, %v445
    %vm447 = vcmp.lt.s32.totalorder %v446, 0
    %v448 = vsub.s32 0, %v446
    %v449 = vsel %vm447, %v448, %v446
    %v450 = vclz %v449
    %v451 = vsub.s32 %v450, 2
    %vm452 = vcmp.gt.s32.totalorder 0, %v451
    %v453 = vsel %vm452, 0, %v451
    %v454 = vsub.s32 32, %v453
    %v455 = vshll.u32 %v446, %v453
    %v456 = vshrl.u32 %v438, %v454
    %v457 = vor.u32 %v455, %v456
    %v458 = vsub.s32 4294967266, %v453
    %v459 = vadd.s32 %v458, 127
    %v460 = vshll.u32 %v459, 23
    %v461 = vor.u32 4788187, %v460
    %v462 = vand.u32 2147483647, %v461
    %v464 = vcvt.s32.f32 %v457
    %v465 = vmul.f32 %v464, %v462
    %v466 = vxor.u32 %v465, 2147483648
    %v467 = vsel %vm346, %v466, %v465
    %v468 = vsub.s32 4, %v444
    %v469 = vsel %vm346, %v468, %v444
    %v470 = vsel %vm345, %v340, %v467
    %v471 = vsel %vm345, 0, %v469
    %v472 = vmul.f32 %v470, %v470
    %v473 = vmul.f32 %v472, -0.001358992
    %v474 = vadd.f32 %v473, 0.041655596
    %v475 = vmul.f32 %v472, %v474
    %v476 = vadd.f32 %v475, -0.4999988
    %v477 = vmul.f32 %v472, %v476
    %v478 = vadd.f32 1.0, %v477
    %v479 = vmul.f32 %v470, %v470
    %v480 = vmul.f32 %v479, -0.00019511016
    %v481 = vadd.f32 %v480, 0.008332121
    %v482 = vmul.f32 %v479, %v481
    %v483 = vadd.f32 %v482, -0.16666654
    %v484 = vmul.f32 %v479, %v483
    %v485 = vadd.f32 %v484, 1.0
    %v486 = vmul.f32 %v485, %v470
    %vm487 = vweird.f32 %v340
    %v488 = vadd.s32 %v471, 3
    %v489 = vand.u32 %v488, 3
    %vm490 = vcmp.lt.s32.totalorder %v489, 2
    %vm491 = vcmp.eq.s32.totalorder %v489, 0
    %v492 = vxor.u32 %v486, 2147483648
    %v493 = vsel %vm491, %v478, %v492
    %vm494 = vcmp.eq.s32.totalorder %v489, 2
    %v495 = vxor.u32 %v478, 2147483648
    %v496 = vsel %vm494, %v495, %v486
    %v497 = vsel %vm490, %v493, %v496
    %v498 = vsel %vm487, nan, %v497
    %v499 = vand.u32 2147483647, %v341
    %vm500 = vcmp.le.f32.partialorder %v499, 0.7853982
    %vm501 = vcmp.lt.s32.totalorder %v341, 0
    %v502 = vand.u32 %v341, 2139095040
    %v503 = vshrl.u32 %v502, 23
    %v504 = vsub.s32 %v503, 127
    %v505 = vand.u32 2147483647, %v341
    %v506 = vand.u32 %v505, 8388607
    %v507 = vor.u32 %v506, 8388608
    %v508 = vsub.s32 0, %v507
    %v509 = vadd.s32 %v504, 1
    %vm510 = vcmp.gt.s32.totalorder %v509, 0
    %v511 = vsel %vm510, %v509, 0
    %v512 = vshrl.u32 %v511, 5
    %v513 = vand.u32 %v511, 31
    %v514 = vsub.s32 32, %v513
    %v515 = vshrl.u32 683565275, %v514
    %v516 = vshll.u32 683565275, %v513
    %v517 = vshrl.u32 2475754826, %v514
    %v518 = vor.u32 %v516, %v517
    %v519 = vshll.u32 2475754826, %v513
    %v520 = vshrl.u32 2131351028, %v514
    %v521 = vor.u32 %v519, %v520
    %v522 = vshll.u32 2131351028, %v513
    %v523 = vshrl.u32 2102212464, %v514
    %v524 = vor.u32 %v522, %v523
    %v525 = vshll.u32 2102212464, %v513
    %v526 = vshrl.u32 920167782, %v514
    %v527 = vor.u32 %v525, %v526
    %v528 = vshll.u32 920167782, %v513
    %v529 = vshrl.u32 1326507024, %v514
    %v530 = vor.u32 %v528, %v529
    %vm531 = vcmp.lt.s32.totalorder %v512, 1
    %vm532 = vcmp.lt.s32.totalorder %v512, 2
    %vm533 = vcmp.lt.s32.totalorder %v512, 3
    %vm534 = vcmp.lt.s32.totalorder %v512, 4
    %v535 = vsel %vm531, %v515, %v518
    %v536 = vsel %vm534, %v524, 2102212464
    %v537 = vsel %vm533, %v521, %v536
    %v538 = vsel %vm532, %v535, %v537
    %v539 = vsel %vm531, %v518, %v521
    %v540 = vsel %vm534, %v527, 920167782
    %v541 = vsel %vm533, %v524, %v540
    %v542 = vsel %vm532, %v539, %v541
    %v543 = vsel %vm531, %v521, %v524
    %v544 = vsel %vm534, %v530, 1326507024
    %v545 = vsel %vm533, %v527, %v544
    %v546 = vsel %vm532, %v543, %v545
    %v547 = vshll.u32 %v507, 8
    %v548 = vand.u32 %v547, 65535
    %v549 = vshrl.u32 %v547, 16
    %v550 = vand.u32 %v546, 65535
    %v551 = vshrl.u32 %v546, 16
    %v552 = vmul.u32 %v548, %v550
    %v553 = vmul.u32 %v548, %v551
    %v554 = vmul.u32 %v549, %v550
    %v555 = vmul.u32 %v549, %v551
    %v556 = vshll.u32 %v553, 16
    %v557 = vshrl.u32 %v553, 16
    %v558 = vshll.u32 %v554, 16
    %v559 = vshrl.u32 %v554, 16
    %vm560 = vc.u32 %v552, %v556
    %v561 = vsel %vm560, 1, 0
    %v562 = vadd.s32 %v552, %v556
    %v563 = vadd.s32 %v555, %v561
    %vm564 = vc.u32 %v562, %v558
    %v565 = vsel %vm564, 1, 0
    %v566 = vadd.s32 %v562, %v558
    %v567 = vadd.s32 %v563, %v565
    %v568 = vadd.s32 %v567, %v557
    %v569 = vadd.s32 %v568, %v559
    %v570 = vand.u32 %v547, 65535
    %v571 = vshrl.u32 %v547, 16
    %v572 = vand.u32 %v542, 65535
    %v573 = vshrl.u32 %v542, 16
    %v574 = vmul.u32 %v570, %v572
    %v575 = vmul.u32 %v570, %v573
    %v576 = vmul.u32 %v571, %v572
    %v577 = vmul.u32 %v571, %v573
    %v578 = vshll.u32 %v575, 16
    %v579 = vshrl.u32 %v575, 16
    %v580 = vshll.u32 %v576, 16
    %v581 = vshrl.u32 %v576, 16
    %vm582 = vc.u32 %v574, %v578
    %v583 = vsel %vm582, 1, 0
    %v584 = vadd.s32 %v574, %v578
    %v585 = vadd.s32 %v577, %v583
    %vm586 = vc.u32 %v584, %v580
    %v587 = vsel %vm586, 1, 0
    %v588 = vadd.s32 %v584, %v580
    %v589 = vadd.s32 %v585, %v587
    %v590 = vadd.s32 %v589, %v579
    %v591 = vadd.s32 %v590, %v581
    %v592 = vmul.u32 %v547, %v538
    %v593 = vadd.s32 %v569, %v588
    %vm594 = vc.u32 %v569, %v588
    %v595 = vadd.s32 %v591, 1
    %v596 = vsel %vm594, %v595, %v591
    %v597 = vadd.s32 %v592, %v596
    %v598 = vadd.s32 %v597, 536870912
    %v599 = vshrl.u32 %v598, 30
    %v600 = vshll.u32 %v599, 30
    %v601 = vsub.s32 %v597, %v600
    %vm602 = vcmp.lt.s32.totalorder %v601, 0
    %v603 = vsub.s32 0, %v601
    %v604 = vsel %vm602, %v603, %v601
    %v605 = vclz %v604
    %v606 = vsub.s32 %v605, 2
    %vm607 = vcmp.gt.s32.totalorder 0, %v606
    %v608 = vsel %vm607, 0, %v606
    %v609 = vsub.s32 32, %v608
    %v610 = vshll.u32 %v601, %v608
    %v611 = vshrl.u32 %v593, %v609
    %v612 = vor.u32 %v610, %v611
    %v613 = vsub.s32 4294967266, %v608
    %v614 = vadd.s32 %v613, 127
    %v615 = vshll.u32 %v614, 23
    %v616 = vor.u32 4788187, %v615
    %v617 = vand.u32 2147483647, %v616
    %v619 = vcvt.s32.f32 %v612
    %v620 = vmul.f32 %v619, %v617
    %v621 = vxor.u32 %v620, 2147483648
    %v622 = vsel %vm501, %v621, %v620
    %v623 = vsub.s32 4, %v599
    %v624 = vsel %vm501, %v623, %v599
    %v625 = vsel %vm500, %v341, %v622
    %v626 = vsel %vm500, 0, %v624
    %v627 = vmul.f32 %v625, %v625
    %v628 = vmul.f32 %v627, -0.001358992
    %v629 = vadd.f32 %v628, 0.041655596
    %v630 = vmul.f32 %v627, %v629
    %v631 = vadd.f32 %v630, -0.4999988
    %v632 = vmul.f32 %v627, %v631
    %v633 = vadd.f32 1.0, %v632
    %v634 = vmul.f32 %v625, %v625
    %v635 = vmul.f32 %v634, -0.00019511016
    %v636 = vadd.f32 %v635, 0.008332121
    %v637 = vmul.f32 %v634, %v636
    %v638 = vadd.f32 %v637, -0.16666654
    %v639 = vmul.f32 %v634, %v638
    %v640 = vadd.f32 %v639, 1.0
    %v641 = vmul.f32 %v640, %v625
    %vm642 = vweird.f32 %v341
    %v643 = vadd.s32 %v626, 3
    %v644 = vand.u32 %v643, 3
    %vm645 = vcmp.lt.s32.totalorder %v644, 2
    %vm646 = vcmp.eq.s32.totalorder %v644, 0
    %v647 = vxor.u32 %v641, 2147483648
    %v648 = vsel %vm646, %v633, %v647
    %vm649 = vcmp.eq.s32.totalorder %v644, 2
    %v650 = vxor.u32 %v633, 2147483648
    %v651 = vsel %vm649, %v650, %v641
    %v652 = vsel %vm645, %v648, %v651
    %v653 = vsel %vm642, nan, %v652
    %v654 = vand.u32 2147483647, %v342
    %vm655 = vcmp.le.f32.partialorder %v654, 0.7853982
    %vm656 = vcmp.lt.s32.totalorder %v342, 0
    %v657 = vand.u32 %v342, 2139095040
    %v658 = vshrl.u32 %v657, 23
    %v659 = vsub.s32 %v658, 127
    %v660 = vand.u32 2147483647, %v342
    %v661 = vand.u32 %v660, 8388607
    %v662 = vor.u32 %v661, 8388608
    %v663 = vsub.s32 0, %v662
    %v664 = vadd.s32 %v659, 1
    %vm665 = vcmp.gt.s32.totalorder %v664, 0
    %v666 = vsel %vm665, %v664, 0
    %v667 = vshrl.u32 %v666, 5
    %v668 = vand.u32 %v666, 31
    %v669 = vsub.s32 32, %v668
    %v670 = vshrl.u32 683565275, %v669
    %v671 = vshll.u32 683565275, %v668
    %v672 = vshrl.u32 2475754826, %v669
    %v673 = vor.u32 %v671, %v672
    %v674 = vshll.u32 2475754826, %v668
    %v675 = vshrl.u32 2131351028, %v669
    %v676 = vor.u32 %v674, %v675
    %v677 = vshll.u32 2131351028, %v668
    %v678 = vshrl.u32 2102212464, %v669
    %v679 = vor.u32 %v677, %v678
    %v680 = vshll.u32 2102212464, %v668
    %v681 = vshrl.u32 920167782, %v669
    %v682 = vor.u32 %v680, %v681
    %v683 = vshll.u32 920167782, %v668
    %v684 = vshrl.u32 1326507024, %v669
    %v685 = vor.u32 %v683, %v684
    %vm686 = vcmp.lt.s32.totalorder %v667, 1
    %vm687 = vcmp.lt.s32.totalorder %v667, 2
    %vm688 = vcmp.lt.s32.totalorder %v667, 3
    %vm689 = vcmp.lt.s32.totalorder %v667, 4
    %v690 = vsel %vm686, %v670, %v673
    %v691 = vsel %vm689, %v679, 2102212464
    %v692 = vsel %vm688, %v676, %v691
    %v693 = vsel %vm687, %v690, %v692
    %v694 = vsel %vm686, %v673, %v676
    %v695 = vsel %vm689, %v682, 920167782
    %v696 = vsel %vm688, %v679, %v695
    %v697 = vsel %vm687, %v694, %v696
    %v698 = vsel %vm686, %v676, %v679
    %v699 = vsel %vm689, %v685, 1326507024
    %v700 = vsel %vm688, %v682, %v699
    %v701 = vsel %vm687, %v698, %v700
    %v702 = vshll.u32 %v662, 8
    %v703 = vand.u32 %v702, 65535
    %v704 = vshrl.u32 %v702, 16
    %v705 = vand.u32 %v701, 65535
    %v706 = vshrl.u32 %v701, 16
    %v707 = vmul.u32 %v703, %v705
    %v708 = vmul.u32 %v703, %v706
    %v709 = vmul.u32 %v704, %v705
    %v710 = vmul.u32 %v704, %v706
    %v711 = vshll.u32 %v708, 16
    %v712 = vshrl.u32 %v708, 16
    %v713 = vshll.u32 %v709, 16
    %v714 = vshrl.u32 %v709, 16
    %vm715 = vc.u32 %v707, %v711
    %v716 = vsel %vm715, 1, 0
    %v717 = vadd.s32 %v707, %v711
    %v718 = vadd.s32 %v710, %v716
    %vm719 = vc.u32 %v717, %v713
    %v720 = vsel %vm719, 1, 0
    %v721 = vadd.s32 %v717, %v713
    %v722 = vadd.s32 %v718, %v720
    %v723 = vadd.s32 %v722, %v712
    %v724 = vadd.s32 %v723, %v714
    %v725 = vand.u32 %v702, 65535
    %v726 = vshrl.u32 %v702, 16
    %v727 = vand.u32 %v697, 65535
    %v728 = vshrl.u32 %v697, 16
    %v729 = vmul.u32 %v725, %v727
    %v730 = vmul.u32 %v725, %v728
    %v731 = vmul.u32 %v726, %v727
    %v732 = vmul.u32 %v726, %v728
    %v733 = vshll.u32 %v730, 16
    %v734 = vshrl.u32 %v730, 16
    %v735 = vshll.u32 %v731, 16
    %v736 = vshrl.u32 %v731, 16
    %vm737 = vc.u32 %v729, %v733
    %v738 = vsel %vm737, 1, 0
    %v739 = vadd.s32 %v729, %v733
    %v740 = vadd.s32 %v732, %v738
    %vm741 = vc.u32 %v739, %v735
    %v742 = vsel %vm741, 1, 0
    %v743 = vadd.s32 %v739, %v735
    %v744 = vadd.s32 %v740, %v742
    %v745 = vadd.s32 %v744, %v734
    %v746 = vadd.s32 %v745, %v736
    %v747 = vmul.u32 %v702, %v693
    %v748 = vadd.s32 %v724, %v743
    %vm749 = vc.u32 %v724, %v743
    %v750 = vadd.s32 %v746, 1
    %v751 = vsel %vm749, %v750, %v746
    %v752 = vadd.s32 %v747, %v751
    %v753 = vadd.s32 %v752, 536870912
    %v754 = vshrl.u32 %v753, 30
    %v755 = vshll.u32 %v754, 30
    %v756 = vsub.s32 %v752, %v755
    %vm757 = vcmp.lt.s32.totalorder %v756, 0
    %v758 = vsub.s32 0, %v756
    %v759 = vsel %vm757, %v758, %v756
    %v760 = vclz %v759
    %v761 = vsub.s32 %v760, 2
    %vm762 = vcmp.gt.s32.totalorder 0, %v761
    %v763 = vsel %vm762, 0, %v761
    %v764 = vsub.s32 32, %v763
    %v765 = vshll.u32 %v756, %v763
    %v766 = vshrl.u32 %v748, %v764
    %v767 = vor.u32 %v765, %v766
    %v768 = vsub.s32 4294967266, %v763
    %v769 = vadd.s32 %v768, 127
    %v770 = vshll.u32 %v769, 23
    %v771 = vor.u32 4788187, %v770
    %v772 = vand.u32 2147483647, %v771
    %v774 = vcvt.s32.f32 %v767
    %v775 = vmul.f32 %v774, %v772
    %v776 = vxor.u32 %v775, 2147483648
    %v777 = vsel %vm656, %v776, %v775
    %v778 = vsub.s32 4, %v754
    %v779 = vsel %vm656, %v778, %v754
    %v780 = vsel %vm655, %v342, %v777
    %v781 = vsel %vm655, 0, %v779
    %v782 = vmul.f32 %v780, %v780
    %v783 = vmul.f32 %v782, -0.001358992
    %v784 = vadd.f32 %v783, 0.041655596
    %v785 = vmul.f32 %v782, %v784
    %v786 = vadd.f32 %v785, -0.4999988
    %v787 = vmul.f32 %v782, %v786
    %v788 = vadd.f32 1.0, %v787
    %v789 = vmul.f32 %v780, %v780
    %v790 = vmul.f32 %v789, -0.00019511016
    %v791 = vadd.f32 %v790, 0.008332121
    %v792 = vmul.f32 %v789, %v791
    %v793 = vadd.f32 %v792, -0.16666654
    %v794 = vmul.f32 %v789, %v793
    %v795 = vadd.f32 %v794, 1.0
    %v796 = vmul.f32 %v795, %v780
    %vm797 = vweird.f32 %v342
    %v798 = vadd.s32 %v781, 3
    %v799 = vand.u32 %v798, 3
    %vm800 = vcmp.lt.s32.totalorder %v799, 2
    %vm801 = vcmp.eq.s32.totalorder %v799, 0
    %v802 = vxor.u32 %v796, 2147483648
    %v803 = vsel %vm801, %v788, %v802
    %vm804 = vcmp.eq.s32.totalorder %v799, 2
    %v805 = vxor.u32 %v788, 2147483648
    %v806 = vsel %vm804, %v805, %v796
    %v807 = vsel %vm800, %v803, %v806
    %v808 = vsel %vm797, nan, %v807
    %v809 = vand.u32 2147483647, %v343
    %vm810 = vcmp.le.f32.partialorder %v809, 0.7853982
    %vm811 = vcmp.lt.s32.totalorder %v343, 0
    %v812 = vand.u32 %v343, 2139095040
    %v813 = vshrl.u32 %v812, 23
    %v814 = vsub.s32 %v813, 127
    %v815 = vand.u32 2147483647, %v343
    %v816 = vand.u32 %v815, 8388607
    %v817 = vor.u32 %v816, 8388608
    %v818 = vsub.s32 0, %v817
    %v819 = vadd.s32 %v814, 1
    %vm820 = vcmp.gt.s32.totalorder %v819, 0
    %v821 = vsel %vm820, %v819, 0
    %v822 = vshrl.u32 %v821, 5
    %v823 = vand.u32 %v821, 31
    %v824 = vsub.s32 32, %v823
    %v825 = vshrl.u32 683565275, %v824
    %v826 = vshll.u32 683565275, %v823
    %v827 = vshrl.u32 2475754826, %v824
    %v828 = vor.u32 %v826, %v827
    %v829 = vshll.u32 2475754826, %v823
    %v830 = vshrl.u32 2131351028, %v824
    %v831 = vor.u32 %v829, %v830
    %v832 = vshll.u32 2131351028, %v823
    %v833 = vshrl.u32 2102212464, %v824
    %v834 = vor.u32 %v832, %v833
    %v835 = vshll.u32 2102212464, %v823
    %v836 = vshrl.u32 920167782, %v824
    %v837 = vor.u32 %v835, %v836
    %v838 = vshll.u32 920167782, %v823
    %v839 = vshrl.u32 1326507024, %v824
    %v840 = vor.u32 %v838, %v839
    %vm841 = vcmp.lt.s32.totalorder %v822, 1
    %vm842 = vcmp.lt.s32.totalorder %v822, 2
    %vm843 = vcmp.lt.s32.totalorder %v822, 3
    %vm844 = vcmp.lt.s32.totalorder %v822, 4
    %v845 = vsel %vm841, %v825, %v828
    %v846 = vsel %vm844, %v834, 2102212464
    %v847 = vsel %vm843, %v831, %v846
    %v848 = vsel %vm842, %v845, %v847
    %v849 = vsel %vm841, %v828, %v831
    %v850 = vsel %vm844, %v837, 920167782
    %v851 = vsel %vm843, %v834, %v850
    %v852 = vsel %vm842, %v849, %v851
    %v853 = vsel %vm841, %v831, %v834
    %v854 = vsel %vm844, %v840, 1326507024
    %v855 = vsel %vm843, %v837, %v854
    %v856 = vsel %vm842, %v853, %v855
    %v857 = vshll.u32 %v817, 8
    %v858 = vand.u32 %v857, 65535
    %v859 = vshrl.u32 %v857, 16
    %v860 = vand.u32 %v856, 65535
    %v861 = vshrl.u32 %v856, 16
    %v862 = vmul.u32 %v858, %v860
    %v863 = vmul.u32 %v858, %v861
    %v864 = vmul.u32 %v859, %v860
    %v865 = vmul.u32 %v859, %v861
    %v866 = vshll.u32 %v863, 16
    %v867 = vshrl.u32 %v863, 16
    %v868 = vshll.u32 %v864, 16
    %v869 = vshrl.u32 %v864, 16
    %vm870 = vc.u32 %v862, %v866
    %v871 = vsel %vm870, 1, 0
    %v872 = vadd.s32 %v862, %v866
    %v873 = vadd.s32 %v865, %v871
    %vm874 = vc.u32 %v872, %v868
    %v875 = vsel %vm874, 1, 0
    %v876 = vadd.s32 %v872, %v868
    %v877 = vadd.s32 %v873, %v875
    %v878 = vadd.s32 %v877, %v867
    %v879 = vadd.s32 %v878, %v869
    %v880 = vand.u32 %v857, 65535
    %v881 = vshrl.u32 %v857, 16
    %v882 = vand.u32 %v852, 65535
    %v883 = vshrl.u32 %v852, 16
    %v884 = vmul.u32 %v880, %v882
    %v885 = vmul.u32 %v880, %v883
    %v886 = vmul.u32 %v881, %v882
    %v887 = vmul.u32 %v881, %v883
    %v888 = vshll.u32 %v885, 16
    %v889 = vshrl.u32 %v885, 16
    %v890 = vshll.u32 %v886, 16
    %v891 = vshrl.u32 %v886, 16
    %vm892 = vc.u32 %v884, %v888
    %v893 = vsel %vm892, 1, 0
    %v894 = vadd.s32 %v884, %v888
    %v895 = vadd.s32 %v887, %v893
    %vm896 = vc.u32 %v894, %v890
    %v897 = vsel %vm896, 1, 0
    %v898 = vadd.s32 %v894, %v890
    %v899 = vadd.s32 %v895, %v897
    %v900 = vadd.s32 %v899, %v889
    %v901 = vadd.s32 %v900, %v891
    %v902 = vmul.u32 %v857, %v848
    %v903 = vadd.s32 %v879, %v898
    %vm904 = vc.u32 %v879, %v898
    %v905 = vadd.s32 %v901, 1
    %v906 = vsel %vm904, %v905, %v901
    %v907 = vadd.s32 %v902, %v906
    %v908 = vadd.s32 %v907, 536870912
    %v909 = vshrl.u32 %v908, 30
    %v910 = vshll.u32 %v909, 30
    %v911 = vsub.s32 %v907, %v910
    %vm912 = vcmp.lt.s32.totalorder %v911, 0
    %v913 = vsub.s32 0, %v911
    %v914 = vsel %vm912, %v913, %v911
    %v915 = vclz %v914
    %v916 = vsub.s32 %v915, 2
    %vm917 = vcmp.gt.s32.totalorder 0, %v916
    %v918 = vsel %vm917, 0, %v916
    %v919 = vsub.s32 32, %v918
    %v920 = vshll.u32 %v911, %v918
    %v921 = vshrl.u32 %v903, %v919
    %v922 = vor.u32 %v920, %v921
    %v923 = vsub.s32 4294967266, %v918
    %v924 = vadd.s32 %v923, 127
    %v925 = vshll.u32 %v924, 23
    %v926 = vor.u32 4788187, %v925
    %v927 = vand.u32 2147483647, %v926
    %v929 = vcvt.s32.f32 %v922
    %v930 = vmul.f32 %v929, %v927
    %v931 = vxor.u32 %v930, 2147483648
    %v932 = vsel %vm811, %v931, %v930
    %v933 = vsub.s32 4, %v909
    %v934 = vsel %vm811, %v933, %v909
    %v935 = vsel %vm810, %v343, %v932
    %v936 = vsel %vm810, 0, %v934
    %v937 = vmul.f32 %v935, %v935
    %v938 = vmul.f32 %v937, -0.001358992
    %v939 = vadd.f32 %v938, 0.041655596
    %v940 = vmul.f32 %v937, %v939
    %v941 = vadd.f32 %v940, -0.4999988
    %v942 = vmul.f32 %v937, %v941
    %v943 = vadd.f32 1.0, %v942
    %v944 = vmul.f32 %v935, %v935
    %v945 = vmul.f32 %v944, -0.00019511016
    %v946 = vadd.f32 %v945, 0.008332121
    %v947 = vmul.f32 %v944, %v946
    %v948 = vadd.f32 %v947, -0.16666654
    %v949 = vmul.f32 %v944, %v948
    %v950 = vadd.f32 %v949, 1.0
    %v951 = vmul.f32 %v950, %v935
    %vm952 = vweird.f32 %v343
    %v953 = vadd.s32 %v936, 3
    %v954 = vand.u32 %v953, 3
    %vm955 = vcmp.lt.s32.totalorder %v954, 2
    %vm956 = vcmp.eq.s32.totalorder %v954, 0
    %v957 = vxor.u32 %v951, 2147483648
    %v958 = vsel %vm956, %v943, %v957
    %vm959 = vcmp.eq.s32.totalorder %v954, 2
    %v960 = vxor.u32 %v943, 2147483648
    %v961 = vsel %vm959, %v960, %v951
    %v962 = vsel %vm955, %v958, %v961
    %v963 = vsel %vm952, nan, %v962
    %v964 = vpack.c.bf16 %v653, %v498
    %v965 = vpack.c.bf16 %v963, %v808
    %v966 = vld [vmem:[%s11] sm:$0xf]
    %v967 = vld [vmem:[%s12] sm:$0xf]
    %vm968 = vcmask 64512
    %v970 = vsel %vm968, %v205, 0
    %v973 = vsel %vm968, %v206, 0
    %vm975 = vcmask 1043456
    %v977 = vsel %vm975, %v967, 0
    %979 = vmatpush.bf16.msra.mxu0 0
    %980 = vmatpush.bf16.msra.mxu0 0
    %981 = vmatpush.bf16.msra.mxu0 0
    %982 = vmatpush.bf16.msra.mxu0 0
    %983 = vmatpush.bf16.msra.mxu0 0
    %984 = vmatpush.bf16.msra.mxu0 0
    %985 = vmatpush.bf16.msra.mxu0 0
    %986 = vmatpush.bf16.msra.mxu0 %v977
    %987 = vmatmul.bf16.gmra.mxu0 %v970
    %v988 = vpop.f32.mrf.mxu0
    %v989 = vadd.f32 0.0, %v988
    %v990 = vpop.f32.mrf.mxu0
    %v991 = vadd.f32 0.0, %v990
    %992 = vmatmul.bf16.gmra.mxu0 %v973
    %v993 = vpop.f32.mrf.mxu0
    %v994 = vadd.f32 0.0, %v993
    %v995 = vpop.f32.mrf.mxu0
    %v996 = vadd.f32 0.0, %v995
    %997 = vdwg.mxu0
    %v999 = vsel %vm968, %v179, 0
    %v1002 = vsel %vm968, %v180, 0
    %v1005 = vsel %vm975, %v966, 0
    %1007 = vmatpush.bf16.msra.mxu0 0
    %1008 = vmatpush.bf16.msra.mxu0 0
    %1009 = vmatpush.bf16.msra.mxu0 0
    %1010 = vmatpush.bf16.msra.mxu0 0
    %1011 = vmatpush.bf16.msra.mxu0 0
    %1012 = vmatpush.bf16.msra.mxu0 0
    %1013 = vmatpush.bf16.msra.mxu0 0
    %1014 = vmatpush.bf16.msra.mxu0 %v1005
    %1015 = vmatmul.bf16.gmra.mxu0 %v999
    %v1016 = vpop.f32.mrf.mxu0
    %v1017 = vadd.f32 %v989, %v1016
    %v1018 = vpop.f32.mrf.mxu0
    %v1019 = vadd.f32 %v991, %v1018
    %1020 = vmatmul.bf16.gmra.mxu0 %v1002
    %v1021 = vpop.f32.mrf.mxu0
    %v1022 = vadd.f32 %v994, %v1021
    %v1023 = vpop.f32.mrf.mxu0
    %v1024 = vadd.f32 %v996, %v1023
    %1025 = vdwg.mxu0
    %v1026 = vld [vmem:[%s2] sm:$0xff]
    %v1027 = vld [vmem:[%s2 + $0x8] sm:$0xff]
    %v1028 = vld [vmem:[%s2 + $0x10] sm:$0xff]
    %v1029 = vld [vmem:[%s2 + $0x18] sm:$0xff]
    %v1030 = vpack.c.bf16 %v1027, %v1026
    %v1031 = vpack.c.bf16 %v1029, %v1028
    %v1032 = vld [vmem:[%s13] sm:$0xf]
    %v1034 = vsel %vm968, %v1030, 0
    %v1037 = vsel %vm968, %v1031, 0
    %v1040 = vsel %vm975, %v1032, 0
    %1042 = vmatpush.bf16.msra.mxu0 0
    %1043 = vmatpush.bf16.msra.mxu0 0
    %1044 = vmatpush.bf16.msra.mxu0 0
    %1045 = vmatpush.bf16.msra.mxu0 0
    %1046 = vmatpush.bf16.msra.mxu0 0
    %1047 = vmatpush.bf16.msra.mxu0 0
    %1048 = vmatpush.bf16.msra.mxu0 0
    %1049 = vmatpush.bf16.msra.mxu0 %v1040
    %1050 = vmatmul.bf16.gmra.mxu0 %v1034
    %v1051 = vpop.f32.mrf.mxu0
    %v1052 = vadd.f32 0.0, %v1051
    %v1053 = vpop.f32.mrf.mxu0
    %v1054 = vadd.f32 0.0, %v1053
    %1055 = vmatmul.bf16.gmra.mxu0 %v1037
    %v1056 = vpop.f32.mrf.mxu0
    %v1057 = vadd.f32 0.0, %v1056
    %v1058 = vpop.f32.mrf.mxu0
    %v1059 = vadd.f32 0.0, %v1058
    %1060 = vdwg.mxu0
    %v1061 = vadd.f32 %v1017, %v1052
    %v1062 = vadd.f32 %v1019, %v1054
    %v1063 = vadd.f32 %v1022, %v1057
    %v1064 = vadd.f32 %v1024, %v1059
    %v1065 = vld [vmem:[%s14] sm:$0xf]
    %v1066 = vld [vmem:[%s14 + $0x4] sm:$0xf]
    %v1067 = vld [vmem:[%s14 + $0x8] sm:$0xf]
    %v1068 = vld [vmem:[%s14 + $0xc] sm:$0xf]
    %v1069 = vld [vmem:[%s14 + $0x10] sm:$0xf]
    %v1070 = vld [vmem:[%s14 + $0x14] sm:$0xf]
    %v1071 = vld [vmem:[%s14 + $0x18] sm:$0xf]
    %v1072 = vld [vmem:[%s14 + $0x1c] sm:$0xf]
    %v1073 = vld [vmem:[%s14 + $0x20] sm:$0xf]
    %v1074 = vld [vmem:[%s14 + $0x24] sm:$0xf]
    %v1075 = vld [vmem:[%s14 + $0x28] sm:$0xf]
    %v1076 = vld [vmem:[%s14 + $0x2c] sm:$0xf]
    %v1077 = vld [vmem:[%s14 + $0x30] sm:$0xf]
    %v1078 = vld [vmem:[%s14 + $0x34] sm:$0xf]
    %v1079 = vld [vmem:[%s14 + $0x38] sm:$0xf]
    %v1080 = vld [vmem:[%s14 + $0x3c] sm:$0xf]
    %v1097 = vunpack.c.l.b16 %v1065
    %v1098 = vunpack.c.l.b16 %v1066
    %v1099 = vunpack.c.l.b16 %v1067
    %v1100 = vunpack.c.l.b16 %v1068
    %v1101 = vunpack.c.l.b16 %v1069
    %v1102 = vunpack.c.l.b16 %v1070
    %v1103 = vunpack.c.l.b16 %v1071
    %v1104 = vunpack.c.l.b16 %v1072
    %v1105 = vunpack.c.l.b16 %v1073
    %v1106 = vunpack.c.l.b16 %v1074
    %v1107 = vunpack.c.l.b16 %v1075
    %v1108 = vunpack.c.l.b16 %v1076
    %v1109 = vunpack.c.l.b16 %v1077
    %v1110 = vunpack.c.l.b16 %v1078
    %v1111 = vunpack.c.l.b16 %v1079
    %v1112 = vunpack.c.l.b16 %v1080
    %v1113 = vpack.c.b16 %v1098, %v1097
    %v1114 = vpack.c.b16 %v1100, %v1099
    %v1115 = vpack.c.b16 %v1102, %v1101
    %v1116 = vpack.c.b16 %v1104, %v1103
    %v1117 = vpack.c.b16 %v1106, %v1105
    %v1118 = vpack.c.b16 %v1108, %v1107
    %v1119 = vpack.c.b16 %v1110, %v1109
    %v1120 = vpack.c.b16 %v1112, %v1111
    %1129 = vmatpush.bf16.msra.mxu0 %v1120
    %1130 = vmatpush.bf16.msra.mxu0 %v1119
    %1131 = vmatpush.bf16.msra.mxu0 %v1118
    %1132 = vmatpush.bf16.msra.mxu0 %v1117
    %1133 = vmatpush.bf16.msra.mxu0 %v1116
    %1134 = vmatpush.bf16.msra.mxu0 %v1115
    %1135 = vmatpush.bf16.msra.mxu0 %v1114
    %1136 = vmatpush.bf16.msra.mxu0 %v1113
    %1137 = vmatmul.bf16.gmra.mxu0 %v964
    %v1138 = vpop.f32.mrf.mxu0
    %v1139 = vadd.f32 0.0, %v1138
    %v1140 = vpop.f32.mrf.mxu0
    %v1141 = vadd.f32 0.0, %v1140
    %1142 = vmatmul.bf16.gmra.mxu0 %v965
    %v1143 = vpop.f32.mrf.mxu0
    %v1144 = vadd.f32 0.0, %v1143
    %v1145 = vpop.f32.mrf.mxu0
    %v1146 = vadd.f32 0.0, %v1145
    %1147 = vdwg.mxu0
    %v1148 = vadd.f32 %v1061, %v1139
    %v1149 = vadd.f32 %v1062, %v1141
    %v1150 = vadd.f32 %v1063, %v1144
    %v1151 = vadd.f32 %v1064, %v1146
    %v1152 = vld [vmem:[%s15] sm:$0x1]
    %v1154 = vperm.slane %v1152, 0
    %v1156 = vadd.f32 %v1148, %v1154
    %v1157 = vadd.f32 %v1149, %v1154
    %v1158 = vadd.f32 %v1150, %v1154
    %v1159 = vadd.f32 %v1151, %v1154
    %v1160 = vld [vmem:[%s7] sm:$0xff]
    %v1161 = vld [vmem:[%s7 + $0x8] sm:$0xff]
    %v1162 = vld [vmem:[%s7 + $0x10] sm:$0xff]
    %v1163 = vld [vmem:[%s7 + $0x18] sm:$0xff]
    %v1164 = vld [vmem:[%s8] sm:$0x1]
    %1165 = vset.pattern.permute.xlu0 0
    %1166 = vperm.xlu0 %1165, %v1160
    %v1167 = vpop.permute.xlu0 %1166
    %1168 = vset.pattern.permute.xlu0 0
    %1169 = vperm.xlu0 %1168, %v1161
    %v1170 = vpop.permute.xlu0 %1169
    %1171 = vset.pattern.permute.xlu0 0
    %1172 = vperm.xlu0 %1171, %v1162
    %v1173 = vpop.permute.xlu0 %1172
    %1174 = vset.pattern.permute.xlu0 0
    %1175 = vperm.xlu0 %1174, %v1163
    %v1176 = vpop.permute.xlu0 %1175
    %v1177 = vperm.slane %v1164, 0
    %vm1178 = vcmp.eq.s32.totalorder %v1167, %v1177
    %vm1179 = vcmp.eq.s32.totalorder %v1170, %v1177
    %vm1180 = vcmp.eq.s32.totalorder %v1173, %v1177
    %vm1181 = vcmp.eq.s32.totalorder %v1176, %v1177
    %v1182 = vsel %vm1178, 0.0, -1e+09
    %v1183 = vsel %vm1179, 0.0, -1e+09
    %v1184 = vsel %vm1180, 0.0, -1e+09
    %v1185 = vsel %vm1181, 0.0, -1e+09
    %v1186 = vpack.c.bf16 %v1157, %v1156
    %v1187 = vpack.c.bf16 %v1159, %v1158
    %v1188 = vld [vmem:[#allocation2] sm:$0xff]
    %v1189 = vld [vmem:[#allocation2 + $0x8] sm:$0xf]
    %v1190 = vld [vmem:[#allocation2 + $0xc] sm:$0xff]
    %v1191 = vld [vmem:[#allocation2 + $0x14] sm:$0xf]
    %v1192 = vld [vmem:[#allocation2 + $0x18] sm:$0xff]
    %v1193 = vld [vmem:[#allocation2 + $0x20] sm:$0xf]
    %v1194 = vld [vmem:[#allocation2 + $0x24] sm:$0xff]
    %v1195 = vld [vmem:[#allocation2 + $0x2c] sm:$0xf]
    %v1196 = vld [vmem:[#allocation2 + $0x30] sm:$0xff]
    %v1197 = vld [vmem:[#allocation2 + $0x38] sm:$0xf]
    %v1198 = vld [vmem:[#allocation2 + $0x3c] sm:$0xff]
    %v1199 = vld [vmem:[#allocation2 + $0x44] sm:$0xf]
    %v1200 = vld [vmem:[#allocation2 + $0x48] sm:$0xff]
    %v1201 = vld [vmem:[#allocation2 + $0x50] sm:$0xf]
    %v1202 = vld [vmem:[#allocation2 + $0x54] sm:$0xff]
    %v1203 = vld [vmem:[#allocation2 + $0x5c] sm:$0xf]
    %v1204 = vld [vmem:[#allocation2 + $0x60] sm:$0xff]
    %v1205 = vld [vmem:[#allocation2 + $0x68] sm:$0xf]
    %v1206 = vld [vmem:[#allocation2 + $0x6c] sm:$0xff]
    %v1207 = vld [vmem:[#allocation2 + $0x74] sm:$0xf]
    %v1208 = vld [vmem:[#allocation2 + $0x78] sm:$0xff]
    %v1209 = vld [vmem:[#allocation2 + $0x80] sm:$0xf]
    %v1210 = vld [vmem:[#allocation2 + $0x84] sm:$0xff]
    %v1211 = vld [vmem:[#allocation2 + $0x8c] sm:$0xf]
    %v1212 = vld [vmem:[#allocation2 + $0x90] sm:$0xff]
    %v1213 = vld [vmem:[#allocation2 + $0x98] sm:$0xf]
    %v1214 = vld [vmem:[#allocation2 + $0x9c] sm:$0xff]
    %v1215 = vld [vmem:[#allocation2 + $0xa4] sm:$0xf]
    %v1216 = vld [vmem:[#allocation2 + $0xa8] sm:$0xff]
    %v1217 = vld [vmem:[#allocation2 + $0xb0] sm:$0xf]
    %v1218 = vld [vmem:[#allocation2 + $0xb4] sm:$0xff]
    %v1219 = vld [vmem:[#allocation2 + $0xbc] sm:$0xf]
    %v1252 = vunpack.c.l.b16 %v1188
    %v1253 = vunpack.c.h.b16 %v1188
    %v1254 = vunpack.c.l.b16 %v1189
    %v1255 = vunpack.c.l.b16 %v1190
    %v1256 = vunpack.c.h.b16 %v1190
    %v1257 = vunpack.c.l.b16 %v1191
    %v1258 = vunpack.c.l.b16 %v1192
    %v1259 = vunpack.c.h.b16 %v1192
    %v1260 = vunpack.c.l.b16 %v1193
    %v1261 = vunpack.c.l.b16 %v1194
    %v1262 = vunpack.c.h.b16 %v1194
    %v1263 = vunpack.c.l.b16 %v1195
    %v1264 = vunpack.c.l.b16 %v1196
    %v1265 = vunpack.c.h.b16 %v1196
    %v1266 = vunpack.c.l.b16 %v1197
    %v1267 = vunpack.c.l.b16 %v1198
    %v1268 = vunpack.c.h.b16 %v1198
    %v1269 = vunpack.c.l.b16 %v1199
    %v1270 = vunpack.c.l.b16 %v1200
    %v1271 = vunpack.c.h.b16 %v1200
    %v1272 = vunpack.c.l.b16 %v1201
    %v1273 = vunpack.c.l.b16 %v1202
    %v1274 = vunpack.c.h.b16 %v1202
    %v1275 = vunpack.c.l.b16 %v1203
    %v1276 = vunpack.c.l.b16 %v1204
    %v1277 = vunpack.c.h.b16 %v1204
    %v1278 = vunpack.c.l.b16 %v1205
    %v1279 = vunpack.c.l.b16 %v1206
    %v1280 = vunpack.c.h.b16 %v1206
    %v1281 = vunpack.c.l.b16 %v1207
    %v1282 = vunpack.c.l.b16 %v1208
    %v1283 = vunpack.c.h.b16 %v1208
    %v1284 = vunpack.c.l.b16 %v1209
    %v1285 = vunpack.c.l.b16 %v1210
    %v1286 = vunpack.c.h.b16 %v1210
    %v1287 = vunpack.c.l.b16 %v1211
    %v1288 = vunpack.c.l.b16 %v1212
    %v1289 = vunpack.c.h.b16 %v1212
    %v1290 = vunpack.c.l.b16 %v1213
    %v1291 = vunpack.c.l.b16 %v1214
    %v1292 = vunpack.c.h.b16 %v1214
    %v1293 = vunpack.c.l.b16 %v1215
    %v1294 = vunpack.c.l.b16 %v1216
    %v1295 = vunpack.c.h.b16 %v1216
    %v1296 = vunpack.c.l.b16 %v1217
    %v1297 = vunpack.c.l.b16 %v1218
    %v1298 = vunpack.c.h.b16 %v1218
    %v1299 = vunpack.c.l.b16 %v1219
    %v1300 = vpack.c.b16 %v1255, %v1252
    %v1301 = vpack.c.b16 %v1256, %v1253
    %v1302 = vpack.c.b16 %v1257, %v1254
    %v1303 = vpack.c.b16 %v1261, %v1258
    %v1304 = vpack.c.b16 %v1262, %v1259
    %v1305 = vpack.c.b16 %v1263, %v1260
    %v1306 = vpack.c.b16 %v1267, %v1264
    %v1307 = vpack.c.b16 %v1268, %v1265
    %v1308 = vpack.c.b16 %v1269, %v1266
    %v1309 = vpack.c.b16 %v1273, %v1270
    %v1310 = vpack.c.b16 %v1274, %v1271
    %v1311 = vpack.c.b16 %v1275, %v1272
    %v1312 = vpack.c.b16 %v1279, %v1276
    %v1313 = vpack.c.b16 %v1280, %v1277
    %v1314 = vpack.c.b16 %v1281, %v1278
    %v1315 = vpack.c.b16 %v1285, %v1282
    %v1316 = vpack.c.b16 %v1286, %v1283
    %v1317 = vpack.c.b16 %v1287, %v1284
    %v1318 = vpack.c.b16 %v1291, %v1288
    %v1319 = vpack.c.b16 %v1292, %v1289
    %v1320 = vpack.c.b16 %v1293, %v1290
    %v1321 = vpack.c.b16 %v1297, %v1294
    %v1322 = vpack.c.b16 %v1298, %v1295
    %v1323 = vpack.c.b16 %v1299, %v1296
    %1348 = vmatpush.bf16.msra.mxu0 %v1321
    %1349 = vmatpush.bf16.msra.mxu0 %v1318
    %1350 = vmatpush.bf16.msra.mxu0 %v1315
    %1351 = vmatpush.bf16.msra.mxu0 %v1312
    %1352 = vmatpush.bf16.msra.mxu0 %v1309
    %1353 = vmatpush.bf16.msra.mxu0 %v1306
    %1354 = vmatpush.bf16.msra.mxu0 %v1303
    %1355 = vmatpush.bf16.msra.mxu0 %v1300
    %1356 = vmatmul.bf16.gmra.mxu0 %v1186
    %v1357 = vpop.f32.mrf.mxu0
    %v1358 = vadd.f32 0.0, %v1357
    %v1359 = vpop.f32.mrf.mxu0
    %v1360 = vadd.f32 0.0, %v1359
    %1361 = vmatmul.bf16.gmra.mxu0 %v1187
    %v1362 = vpop.f32.mrf.mxu0
    %v1363 = vadd.f32 0.0, %v1362
    %v1364 = vpop.f32.mrf.mxu0
    %v1365 = vadd.f32 0.0, %v1364
    %1366 = vdwg.mxu0
    %1367 = vmatpush.bf16.msra.mxu0 %v1322
    %1368 = vmatpush.bf16.msra.mxu0 %v1319
    %1369 = vmatpush.bf16.msra.mxu0 %v1316
    %1370 = vmatpush.bf16.msra.mxu0 %v1313
    %1371 = vmatpush.bf16.msra.mxu0 %v1310
    %1372 = vmatpush.bf16.msra.mxu0 %v1307
    %1373 = vmatpush.bf16.msra.mxu0 %v1304
    %1374 = vmatpush.bf16.msra.mxu0 %v1301
    %1375 = vmatmul.bf16.gmra.mxu0 %v1186
    %v1376 = vpop.f32.mrf.mxu0
    %v1377 = vadd.f32 0.0, %v1376
    %v1378 = vpop.f32.mrf.mxu0
    %v1379 = vadd.f32 0.0, %v1378
    %1380 = vmatmul.bf16.gmra.mxu0 %v1187
    %v1381 = vpop.f32.mrf.mxu0
    %v1382 = vadd.f32 0.0, %v1381
    %v1383 = vpop.f32.mrf.mxu0
    %v1384 = vadd.f32 0.0, %v1383
    %1385 = vdwg.mxu0
    %1386 = vmatpush.bf16.msra.mxu0 %v1323
    %1387 = vmatpush.bf16.msra.mxu0 %v1320
    %1388 = vmatpush.bf16.msra.mxu0 %v1317
    %1389 = vmatpush.bf16.msra.mxu0 %v1314
    %1390 = vmatpush.bf16.msra.mxu0 %v1311
    %1391 = vmatpush.bf16.msra.mxu0 %v1308
    %1392 = vmatpush.bf16.msra.mxu0 %v1305
    %1393 = vmatpush.bf16.msra.mxu0 %v1302
    %1394 = vmatmul.bf16.gmra.mxu0 %v1186
    %v1395 = vpop.f32.mrf.mxu0
    %v1396 = vadd.f32 0.0, %v1395
    %v1397 = vpop.f32.mrf.mxu0
    %v1398 = vadd.f32 0.0, %v1397
    %1399 = vmatmul.bf16.gmra.mxu0 %v1187
    %v1400 = vpop.f32.mrf.mxu0
    %v1401 = vadd.f32 0.0, %v1400
    %v1402 = vpop.f32.mrf.mxu0
    %v1403 = vadd.f32 0.0, %v1402
    %1404 = vdwg.mxu0
    %v1405 = vpack.c.bf16 %v1360, %v1358
    %v1406 = vpack.c.bf16 %v1365, %v1363
    %vm1407 = vcmp.ge.s32.totalorder %v154, 0
    %vm1408 = vcmp.lt.s32.totalorder %v154, 32
    %vm1409 = vmand %vm1407, %vm1408
    %v1410 = vsel %vm1409, %v1377, 0.0
    %v1411 = vsel %vm1409, %v1379, 0.0
    %v1412 = vsel %vm1409, %v1382, 0.0
    %v1413 = vsel %vm1409, %v1384, 0.0
    %v1414 = vpack.c.bf16 %v1411, %v1410
    %v1415 = vpack.c.bf16 %v1413, %v1412
    %v1416 = vsel %vm1409, %v1396, 0.0
    %v1417 = vsel %vm1409, %v1398, 0.0
    %v1418 = vsel %vm1409, %v1401, 0.0
    %v1419 = vsel %vm1409, %v1403, 0.0
    %v1420 = vpack.c.bf16 %v1417, %v1416
    %v1421 = vpack.c.bf16 %v1419, %v1418
    %1422 = vmatpush.bf16.xpose.msra.mxu0 0
    %1423 = vmatpush.bf16.xpose.msra.mxu0 0
    %1424 = vmatpush.bf16.xpose.msra.mxu0 0
    %1425 = vmatpush.bf16.xpose.msra.mxu0 0
    %1426 = vmatpush.bf16.xpose.msra.mxu0 0
    %1427 = vmatpush.bf16.xpose.msra.mxu0 0
    %1428 = vmatpush.bf16.xpose.msra.mxu0 %v1415
    %1429 = vmatpush.bf16.xpose.msra.mxu0 %v1414
    %1430 = vmatmul.bf16.gmra.mxu0 %v1405
    %v1431 = vpop.f32.mrf.mxu0
    %v1432 = vadd.f32 0.0, %v1431
    %v1433 = vpop.f32.mrf.mxu0
    %v1434 = vadd.f32 0.0, %v1433
    %1435 = vmatmul.bf16.gmra.mxu0 %v1406
    %v1436 = vpop.f32.mrf.mxu0
    %v1437 = vadd.f32 0.0, %v1436
    %v1438 = vpop.f32.mrf.mxu0
    %v1439 = vadd.f32 0.0, %v1438
    %1440 = vdwg.mxu0
    %v1441 = vmul.f32 %v1432, 0.17677669
    %v1442 = vmul.f32 %v1434, 0.17677669
    %v1443 = vmul.f32 %v1437, 0.17677669
    %v1444 = vmul.f32 %v1439, 0.17677669
    %v1445 = vadd.f32 %v1441, %v1182
    %v1446 = vadd.f32 %v1442, %v1183
    %v1447 = vadd.f32 %v1443, %v1184
    %v1448 = vadd.f32 %v1444, %v1185
    %vm1449 = vcmask 261120
    %v1450 = vsel %vm1449, %v1445, -inf
    %1451 = vmax.xlane.f32.xlu0 %v1450
    %v1452 = vpop.xlane.xlu0 %1451
    %v1453 = vsel %vm1449, %v1446, -inf
    %1454 = vmax.xlane.f32.xlu0 %v1453
    %v1455 = vpop.xlane.xlu0 %1454
    %v1456 = vsel %vm1449, %v1447, -inf
    %1457 = vmax.xlane.f32.xlu0 %v1456
    %v1458 = vpop.xlane.xlu0 %1457
    %v1459 = vsel %vm1449, %v1448, -inf
    %1460 = vmax.xlane.f32.xlu0 %v1459
    %v1461 = vpop.xlane.xlu0 %1460
    %v1462 = vsub.f32 %v1445, %v1452
    %v1463 = vsub.f32 %v1446, %v1455
    %v1464 = vsub.f32 %v1447, %v1458
    %v1465 = vsub.f32 %v1448, %v1461
    %v1466 = vmul.f32 %v1462, 1.442695
    %v1467 = vpow.pop %v1466
    %v1468 = vmul.f32 %v1463, 1.442695
    %v1469 = vpow.pop %v1468
    %v1470 = vmul.f32 %v1464, 1.442695
    %v1471 = vpow.pop %v1470
    %v1472 = vmul.f32 %v1465, 1.442695
    %v1473 = vpow.pop %v1472
    %v1474 = vsel %vm1449, %v1467, 0.0
    %1475 = vadd.xlane.f32.xlu0 %v1474
    %v1476 = vpop.xlane.xlu0 %1475
    %v1477 = vsel %vm1449, %v1469, 0.0
    %1478 = vadd.xlane.f32.xlu0 %v1477
    %v1479 = vpop.xlane.xlu0 %1478
    %v1480 = vsel %vm1449, %v1471, 0.0
    %1481 = vadd.xlane.f32.xlu0 %v1480
    %v1482 = vpop.xlane.xlu0 %1481
    %v1483 = vsel %vm1449, %v1473, 0.0
    %1484 = vadd.xlane.f32.xlu0 %v1483
    %v1485 = vpop.xlane.xlu0 %1484
    %v1486 = vrcp.pop %v1476
    %v1487 = vrcp.pop %v1479
    %v1488 = vrcp.pop %v1482
    %v1489 = vrcp.pop %v1485
    %v1490 = vmul.f32 %v1467, %v1486
    %v1491 = vmul.f32 %v1469, %v1487
    %v1492 = vmul.f32 %v1471, %v1488
    %v1493 = vmul.f32 %v1473, %v1489
    %v1494 = vpack.c.bf16 %v1491, %v1490
    %v1495 = vpack.c.bf16 %v1493, %v1492
    %vm1496 = vcmp.ge.s32.totalorder %v154, 32
    %vm1497 = vcmp.lt.s32.totalorder %v154, 64
    %vm1498 = vmand %vm1496, %vm1497
    %v1499 = vsel %vm1498, %v1377, 0.0
    %v1500 = vsel %vm1498, %v1379, 0.0
    %v1501 = vsel %vm1498, %v1382, 0.0
    %v1502 = vsel %vm1498, %v1384, 0.0
    %v1503 = vpack.c.bf16 %v1500, %v1499
    %v1504 = vpack.c.bf16 %v1502, %v1501
    %v1505 = vsel %vm1498, %v1396, 0.0
    %v1506 = vsel %vm1498, %v1398, 0.0
    %v1507 = vsel %vm1498, %v1401, 0.0
    %v1508 = vsel %vm1498, %v1403, 0.0
    %v1509 = vpack.c.bf16 %v1506, %v1505
    %v1510 = vpack.c.bf16 %v1508, %v1507
    %1511 = vmatpush.bf16.xpose.msra.mxu0 0
    %1512 = vmatpush.bf16.xpose.msra.mxu0 0
    %1513 = vmatpush.bf16.xpose.msra.mxu0 0
    %1514 = vmatpush.bf16.xpose.msra.mxu0 0
    %1515 = vmatpush.bf16.xpose.msra.mxu0 0
    %1516 = vmatpush.bf16.xpose.msra.mxu0 0
    %1517 = vmatpush.bf16.xpose.msra.mxu0 %v1504
    %1518 = vmatpush.bf16.xpose.msra.mxu0 %v1503
    %1519 = vmatmul.bf16.gmra.mxu0 %v1405
    %v1520 = vpop.f32.mrf.mxu0
    %v1521 = vadd.f32 0.0, %v1520
    %v1522 = vpop.f32.mrf.mxu0
    %v1523 = vadd.f32 0.0, %v1522
    %1524 = vmatmul.bf16.gmra.mxu0 %v1406
    %v1525 = vpop.f32.mrf.mxu0
    %v1526 = vadd.f32 0.0, %v1525
    %v1527 = vpop.f32.mrf.mxu0
    %v1528 = vadd.f32 0.0, %v1527
    %1529 = vdwg.mxu0
    %v1530 = vmul.f32 %v1521, 0.17677669
    %v1531 = vmul.f32 %v1523, 0.17677669
    %v1532 = vmul.f32 %v1526, 0.17677669
    %v1533 = vmul.f32 %v1528, 0.17677669
    %v1534 = vadd.f32 %v1530, %v1182
    %v1535 = vadd.f32 %v1531, %v1183
    %v1536 = vadd.f32 %v1532, %v1184
    %v1537 = vadd.f32 %v1533, %v1185
    %v1538 = vsel %vm1449, %v1534, -inf
    %1539 = vmax.xlane.f32.xlu0 %v1538
    %v1540 = vpop.xlane.xlu0 %1539
    %v1541 = vsel %vm1449, %v1535, -inf
    %1542 = vmax.xlane.f32.xlu0 %v1541
    %v1543 = vpop.xlane.xlu0 %1542
    %v1544 = vsel %vm1449, %v1536, -inf
    %1545 = vmax.xlane.f32.xlu0 %v1544
    %v1546 = vpop.xlane.xlu0 %1545
    %v1547 = vsel %vm1449, %v1537, -inf
    %1548 = vmax.xlane.f32.xlu0 %v1547
    %v1549 = vpop.xlane.xlu0 %1548
    %v1550 = vsub.f32 %v1534, %v1540
    %v1551 = vsub.f32 %v1535, %v1543
    %v1552 = vsub.f32 %v1536, %v1546
    %v1553 = vsub.f32 %v1537, %v1549
    %v1554 = vmul.f32 %v1550, 1.442695
    %v1555 = vpow.pop %v1554
    %v1556 = vmul.f32 %v1551, 1.442695
    %v1557 = vpow.pop %v1556
    %v1558 = vmul.f32 %v1552, 1.442695
    %v1559 = vpow.pop %v1558
    %v1560 = vmul.f32 %v1553, 1.442695
    %v1561 = vpow.pop %v1560
    %v1562 = vsel %vm1449, %v1555, 0.0
    %1563 = vadd.xlane.f32.xlu0 %v1562
    %v1564 = vpop.xlane.xlu0 %1563
    %v1565 = vsel %vm1449, %v1557, 0.0
    %1566 = vadd.xlane.f32.xlu0 %v1565
    %v1567 = vpop.xlane.xlu0 %1566
    %v1568 = vsel %vm1449, %v1559, 0.0
    %1569 = vadd.xlane.f32.xlu0 %v1568
    %v1570 = vpop.xlane.xlu0 %1569
    %v1571 = vsel %vm1449, %v1561, 0.0
    %1572 = vadd.xlane.f32.xlu0 %v1571
    %v1573 = vpop.xlane.xlu0 %1572
    %v1574 = vrcp.pop %v1564
    %v1575 = vrcp.pop %v1567
    %v1576 = vrcp.pop %v1570
    %v1577 = vrcp.pop %v1573
    %v1578 = vmul.f32 %v1555, %v1574
    %v1579 = vmul.f32 %v1557, %v1575
    %v1580 = vmul.f32 %v1559, %v1576
    %v1581 = vmul.f32 %v1561, %v1577
    %v1582 = vpack.c.bf16 %v1579, %v1578
    %v1583 = vpack.c.bf16 %v1581, %v1580
    %v1585 = vsel %vm1449, %v1582, 0
    %v1588 = vsel %vm1449, %v1583, 0
    %1590 = vmatpush.bf16.msra.mxu0 0
    %1591 = vmatpush.bf16.msra.mxu0 0
    %1592 = vmatpush.bf16.msra.mxu0 0
    %1593 = vmatpush.bf16.msra.mxu0 0
    %1594 = vmatpush.bf16.msra.mxu0 0
    %1595 = vmatpush.bf16.msra.mxu0 0
    %1596 = vmatpush.bf16.msra.mxu0 %v1510
    %1597 = vmatpush.bf16.msra.mxu0 %v1509
    %1598 = vmatmul.bf16.gmra.mxu0 %v1585
    %v1599 = vpop.f32.mrf.mxu0
    %v1600 = vadd.f32 0.0, %v1599
    %v1601 = vpop.f32.mrf.mxu0
    %v1602 = vadd.f32 0.0, %v1601
    %1603 = vmatmul.bf16.gmra.mxu0 %v1588
    %v1604 = vpop.f32.mrf.mxu0
    %v1605 = vadd.f32 0.0, %v1604
    %v1606 = vpop.f32.mrf.mxu0
    %v1607 = vadd.f32 0.0, %v1606
    %1608 = vdwg.mxu0
    %v1610 = vsel %vm1449, %v1494, 0
    %v1613 = vsel %vm1449, %v1495, 0
    %1615 = vmatpush.bf16.msra.mxu0 0
    %1616 = vmatpush.bf16.msra.mxu0 0
    %1617 = vmatpush.bf16.msra.mxu0 0
    %1618 = vmatpush.bf16.msra.mxu0 0
    %1619 = vmatpush.bf16.msra.mxu0 0
    %1620 = vmatpush.bf16.msra.mxu0 0
    %1621 = vmatpush.bf16.msra.mxu0 %v1421
    %1622 = vmatpush.bf16.msra.mxu0 %v1420
    %1623 = vmatmul.bf16.gmra.mxu0 %v1610
    %v1624 = vpop.f32.mrf.mxu0
    %v1625 = vadd.f32 %v1600, %v1624
    %v1626 = vpop.f32.mrf.mxu0
    %v1627 = vadd.f32 %v1602, %v1626
    %1628 = vmatmul.bf16.gmra.mxu0 %v1613
    %v1629 = vpop.f32.mrf.mxu0
    %v1630 = vadd.f32 %v1605, %v1629
    %v1631 = vpop.f32.mrf.mxu0
    %v1632 = vadd.f32 %v1607, %v1631
    %1633 = vdwg.mxu0
    %vm1634 = vcmp.ge.s32.totalorder %v154, 64
    %vm1635 = vcmp.lt.s32.totalorder %v154, 96
    %vm1636 = vmand %vm1634, %vm1635
    %v1637 = vsel %vm1636, %v1377, 0.0
    %v1638 = vsel %vm1636, %v1379, 0.0
    %v1639 = vsel %vm1636, %v1382, 0.0
    %v1640 = vsel %vm1636, %v1384, 0.0
    %v1641 = vpack.c.bf16 %v1638, %v1637
    %v1642 = vpack.c.bf16 %v1640, %v1639
    %v1643 = vsel %vm1636, %v1396, 0.0
    %v1644 = vsel %vm1636, %v1398, 0.0
    %v1645 = vsel %vm1636, %v1401, 0.0
    %v1646 = vsel %vm1636, %v1403, 0.0
    %v1647 = vpack.c.bf16 %v1644, %v1643
    %v1648 = vpack.c.bf16 %v1646, %v1645
    %1649 = vmatpush.bf16.xpose.msra.mxu0 0
    %1650 = vmatpush.bf16.xpose.msra.mxu0 0
    %1651 = vmatpush.bf16.xpose.msra.mxu0 0
    %1652 = vmatpush.bf16.xpose.msra.mxu0 0
    %1653 = vmatpush.bf16.xpose.msra.mxu0 0
    %1654 = vmatpush.bf16.xpose.msra.mxu0 0
    %1655 = vmatpush.bf16.xpose.msra.mxu0 %v1642
    %1656 = vmatpush.bf16.xpose.msra.mxu0 %v1641
    %1657 = vmatmul.bf16.gmra.mxu0 %v1405
    %v1658 = vpop.f32.mrf.mxu0
    %v1659 = vadd.f32 0.0, %v1658
    %v1660 = vpop.f32.mrf.mxu0
    %v1661 = vadd.f32 0.0, %v1660
    %1662 = vmatmul.bf16.gmra.mxu0 %v1406
    %v1663 = vpop.f32.mrf.mxu0
    %v1664 = vadd.f32 0.0, %v1663
    %v1665 = vpop.f32.mrf.mxu0
    %v1666 = vadd.f32 0.0, %v1665
    %1667 = vdwg.mxu0
    %v1668 = vmul.f32 %v1659, 0.17677669
    %v1669 = vmul.f32 %v1661, 0.17677669
    %v1670 = vmul.f32 %v1664, 0.17677669
    %v1671 = vmul.f32 %v1666, 0.17677669
    %v1672 = vadd.f32 %v1668, %v1182
    %v1673 = vadd.f32 %v1669, %v1183
    %v1674 = vadd.f32 %v1670, %v1184
    %v1675 = vadd.f32 %v1671, %v1185
    %v1676 = vsel %vm1449, %v1672, -inf
    %1677 = vmax.xlane.f32.xlu0 %v1676
    %v1678 = vpop.xlane.xlu0 %1677
    %v1679 = vsel %vm1449, %v1673, -inf
    %1680 = vmax.xlane.f32.xlu0 %v1679
    %v1681 = vpop.xlane.xlu0 %1680
    %v1682 = vsel %vm1449, %v1674, -inf
    %1683 = vmax.xlane.f32.xlu0 %v1682
    %v1684 = vpop.xlane.xlu0 %1683
    %v1685 = vsel %vm1449, %v1675, -inf
    %1686 = vmax.xlane.f32.xlu0 %v1685
    %v1687 = vpop.xlane.xlu0 %1686
    %v1688 = vsub.f32 %v1672, %v1678
    %v1689 = vsub.f32 %v1673, %v1681
    %v1690 = vsub.f32 %v1674, %v1684
    %v1691 = vsub.f32 %v1675, %v1687
    %v1692 = vmul.f32 %v1688, 1.442695
    %v1693 = vpow.pop %v1692
    %v1694 = vmul.f32 %v1689, 1.442695
    %v1695 = vpow.pop %v1694
    %v1696 = vmul.f32 %v1690, 1.442695
    %v1697 = vpow.pop %v1696
    %v1698 = vmul.f32 %v1691, 1.442695
    %v1699 = vpow.pop %v1698
    %v1700 = vsel %vm1449, %v1693, 0.0
    %1701 = vadd.xlane.f32.xlu0 %v1700
    %v1702 = vpop.xlane.xlu0 %1701
    %v1703 = vsel %vm1449, %v1695, 0.0
    %1704 = vadd.xlane.f32.xlu0 %v1703
    %v1705 = vpop.xlane.xlu0 %1704
    %v1706 = vsel %vm1449, %v1697, 0.0
    %1707 = vadd.xlane.f32.xlu0 %v1706
    %v1708 = vpop.xlane.xlu0 %1707
    %v1709 = vsel %vm1449, %v1699, 0.0
    %1710 = vadd.xlane.f32.xlu0 %v1709
    %v1711 = vpop.xlane.xlu0 %1710
    %v1712 = vrcp.pop %v1702
    %v1713 = vrcp.pop %v1705
    %v1714 = vrcp.pop %v1708
    %v1715 = vrcp.pop %v1711
    %v1716 = vmul.f32 %v1693, %v1712
    %v1717 = vmul.f32 %v1695, %v1713
    %v1718 = vmul.f32 %v1697, %v1714
    %v1719 = vmul.f32 %v1699, %v1715
    %v1720 = vpack.c.bf16 %v1717, %v1716
    %v1721 = vpack.c.bf16 %v1719, %v1718
    %v1723 = vsel %vm1449, %v1720, 0
    %v1726 = vsel %vm1449, %v1721, 0
    %1728 = vmatpush.bf16.msra.mxu0 0
    %1729 = vmatpush.bf16.msra.mxu0 0
    %1730 = vmatpush.bf16.msra.mxu0 0
    %1731 = vmatpush.bf16.msra.mxu0 0
    %1732 = vmatpush.bf16.msra.mxu0 0
    %1733 = vmatpush.bf16.msra.mxu0 0
    %1734 = vmatpush.bf16.msra.mxu0 %v1648
    %1735 = vmatpush.bf16.msra.mxu0 %v1647
    %1736 = vmatmul.bf16.gmra.mxu0 %v1723
    %v1737 = vpop.f32.mrf.mxu0
    %v1738 = vadd.f32 0.0, %v1737
    %v1739 = vpop.f32.mrf.mxu0
    %v1740 = vadd.f32 0.0, %v1739
    %1741 = vmatmul.bf16.gmra.mxu0 %v1726
    %v1742 = vpop.f32.mrf.mxu0
    %v1743 = vadd.f32 0.0, %v1742
    %v1744 = vpop.f32.mrf.mxu0
    %v1745 = vadd.f32 0.0, %v1744
    %1746 = vdwg.mxu0
    %v1747 = vadd.f32 %v1625, %v1738
    %v1748 = vadd.f32 %v1627, %v1740
    %v1749 = vadd.f32 %v1630, %v1743
    %v1750 = vadd.f32 %v1632, %v1745
    %vm1751 = vcmp.ge.s32.totalorder %v154, 96
    %vm1752 = vcmp.lt.s32.totalorder %v154, 128
    %vm1753 = vmand %vm1751, %vm1752
    %v1754 = vsel %vm1753, %v1377, 0.0
    %v1755 = vsel %vm1753, %v1379, 0.0
    %v1756 = vsel %vm1753, %v1382, 0.0
    %v1757 = vsel %vm1753, %v1384, 0.0
    %v1758 = vpack.c.bf16 %v1755, %v1754
    %v1759 = vpack.c.bf16 %v1757, %v1756
    %v1760 = vsel %vm1753, %v1396, 0.0
    %v1761 = vsel %vm1753, %v1398, 0.0
    %v1762 = vsel %vm1753, %v1401, 0.0
    %v1763 = vsel %vm1753, %v1403, 0.0
    %v1764 = vpack.c.bf16 %v1761, %v1760
    %v1765 = vpack.c.bf16 %v1763, %v1762
    %1766 = vmatpush.bf16.xpose.msra.mxu0 0
    %1767 = vmatpush.bf16.xpose.msra.mxu0 0
    %1768 = vmatpush.bf16.xpose.msra.mxu0 0
    %1769 = vmatpush.bf16.xpose.msra.mxu0 0
    %1770 = vmatpush.bf16.xpose.msra.mxu0 0
    %1771 = vmatpush.bf16.xpose.msra.mxu0 0
    %1772 = vmatpush.bf16.xpose.msra.mxu0 %v1759
    %1773 = vmatpush.bf16.xpose.msra.mxu0 %v1758
    %1774 = vmatmul.bf16.gmra.mxu0 %v1405
    %v1775 = vpop.f32.mrf.mxu0
    %v1776 = vadd.f32 0.0, %v1775
    %v1777 = vpop.f32.mrf.mxu0
    %v1778 = vadd.f32 0.0, %v1777
    %1779 = vmatmul.bf16.gmra.mxu0 %v1406
    %v1780 = vpop.f32.mrf.mxu0
    %v1781 = vadd.f32 0.0, %v1780
    %v1782 = vpop.f32.mrf.mxu0
    %v1783 = vadd.f32 0.0, %v1782
    %1784 = vdwg.mxu0
    %v1785 = vmul.f32 %v1776, 0.17677669
    %v1786 = vmul.f32 %v1778, 0.17677669
    %v1787 = vmul.f32 %v1781, 0.17677669
    %v1788 = vmul.f32 %v1783, 0.17677669
    %v1789 = vadd.f32 %v1785, %v1182
    %v1790 = vadd.f32 %v1786, %v1183
    %v1791 = vadd.f32 %v1787, %v1184
    %v1792 = vadd.f32 %v1788, %v1185
    %v1793 = vsel %vm1449, %v1789, -inf
    %1794 = vmax.xlane.f32.xlu0 %v1793
    %v1795 = vpop.xlane.xlu0 %1794
    %v1796 = vsel %vm1449, %v1790, -inf
    %1797 = vmax.xlane.f32.xlu0 %v1796
    %v1798 = vpop.xlane.xlu0 %1797
    %v1799 = vsel %vm1449, %v1791, -inf
    %1800 = vmax.xlane.f32.xlu0 %v1799
    %v1801 = vpop.xlane.xlu0 %1800
    %v1802 = vsel %vm1449, %v1792, -inf
    %1803 = vmax.xlane.f32.xlu0 %v1802
    %v1804 = vpop.xlane.xlu0 %1803
    %v1805 = vsub.f32 %v1789, %v1795
    %v1806 = vsub.f32 %v1790, %v1798
    %v1807 = vsub.f32 %v1791, %v1801
    %v1808 = vsub.f32 %v1792, %v1804
    %v1809 = vmul.f32 %v1805, 1.442695
    %v1810 = vpow.pop %v1809
    %v1811 = vmul.f32 %v1806, 1.442695
    %v1812 = vpow.pop %v1811
    %v1813 = vmul.f32 %v1807, 1.442695
    %v1814 = vpow.pop %v1813
    %v1815 = vmul.f32 %v1808, 1.442695
    %v1816 = vpow.pop %v1815
    %v1817 = vsel %vm1449, %v1810, 0.0
    %1818 = vadd.xlane.f32.xlu0 %v1817
    %v1819 = vpop.xlane.xlu0 %1818
    %v1820 = vsel %vm1449, %v1812, 0.0
    %1821 = vadd.xlane.f32.xlu0 %v1820
    %v1822 = vpop.xlane.xlu0 %1821
    %v1823 = vsel %vm1449, %v1814, 0.0
    %1824 = vadd.xlane.f32.xlu0 %v1823
    %v1825 = vpop.xlane.xlu0 %1824
    %v1826 = vsel %vm1449, %v1816, 0.0
    %1827 = vadd.xlane.f32.xlu0 %v1826
    %v1828 = vpop.xlane.xlu0 %1827
    %v1829 = vrcp.pop %v1819
    %v1830 = vrcp.pop %v1822
    %v1831 = vrcp.pop %v1825
    %v1832 = vrcp.pop %v1828
    %v1833 = vmul.f32 %v1810, %v1829
    %v1834 = vmul.f32 %v1812, %v1830
    %v1835 = vmul.f32 %v1814, %v1831
    %v1836 = vmul.f32 %v1816, %v1832
    %v1837 = vpack.c.bf16 %v1834, %v1833
    %v1838 = vpack.c.bf16 %v1836, %v1835
    %v1840 = vsel %vm1449, %v1837, 0
    %v1843 = vsel %vm1449, %v1838, 0
    %1845 = vmatpush.bf16.msra.mxu0 0
    %1846 = vmatpush.bf16.msra.mxu0 0
    %1847 = vmatpush.bf16.msra.mxu0 0
    %1848 = vmatpush.bf16.msra.mxu0 0
    %1849 = vmatpush.bf16.msra.mxu0 0
    %1850 = vmatpush.bf16.msra.mxu0 0
    %1851 = vmatpush.bf16.msra.mxu0 %v1765
    %1852 = vmatpush.bf16.msra.mxu0 %v1764
    %1853 = vmatmul.bf16.gmra.mxu0 %v1840
    %v1854 = vpop.f32.mrf.mxu0
    %v1855 = vadd.f32 0.0, %v1854
    %v1856 = vpop.f32.mrf.mxu0
    %v1857 = vadd.f32 0.0, %v1856
    %1858 = vmatmul.bf16.gmra.mxu0 %v1843
    %v1859 = vpop.f32.mrf.mxu0
    %v1860 = vadd.f32 0.0, %v1859
    %v1861 = vpop.f32.mrf.mxu0
    %v1862 = vadd.f32 0.0, %v1861
    %1863 = vdwg.mxu0
    %v1864 = vadd.f32 %v1747, %v1855
    %v1865 = vadd.f32 %v1748, %v1857
    %v1866 = vadd.f32 %v1749, %v1860
    %v1867 = vadd.f32 %v1750, %v1862
    %v1868 = vpack.c.bf16 %v1865, %v1864
    %v1869 = vpack.c.bf16 %v1867, %v1866
    %v1870 = vld [vmem:[#allocation4] sm:$0xf]
    %v1871 = vld [vmem:[#allocation4 + $0x4] sm:$0xf]
    %v1872 = vld [vmem:[#allocation4 + $0x8] sm:$0xf]
    %v1873 = vld [vmem:[#allocation4 + $0xc] sm:$0xf]
    %v1874 = vld [vmem:[#allocation4 + $0x10] sm:$0xf]
    %v1875 = vld [vmem:[#allocation4 + $0x14] sm:$0xf]
    %v1876 = vld [vmem:[#allocation4 + $0x18] sm:$0xf]
    %v1877 = vld [vmem:[#allocation4 + $0x1c] sm:$0xf]
    %v1878 = vld [vmem:[#allocation4 + $0x20] sm:$0xf]
    %v1879 = vld [vmem:[#allocation4 + $0x24] sm:$0xf]
    %v1880 = vld [vmem:[#allocation4 + $0x28] sm:$0xf]
    %v1881 = vld [vmem:[#allocation4 + $0x2c] sm:$0xf]
    %v1882 = vld [vmem:[#allocation4 + $0x30] sm:$0xf]
    %v1883 = vld [vmem:[#allocation4 + $0x34] sm:$0xf]
    %v1884 = vld [vmem:[#allocation4 + $0x38] sm:$0xf]
    %v1885 = vld [vmem:[#allocation4 + $0x3c] sm:$0xf]
    %v1902 = vunpack.c.l.b16 %v1870
    %v1903 = vunpack.c.l.b16 %v1871
    %v1904 = vunpack.c.l.b16 %v1872
    %v1905 = vunpack.c.l.b16 %v1873
    %v1906 = vunpack.c.l.b16 %v1874
    %v1907 = vunpack.c.l.b16 %v1875
    %v1908 = vunpack.c.l.b16 %v1876
    %v1909 = vunpack.c.l.b16 %v1877
    %v1910 = vunpack.c.l.b16 %v1878
    %v1911 = vunpack.c.l.b16 %v1879
    %v1912 = vunpack.c.l.b16 %v1880
    %v1913 = vunpack.c.l.b16 %v1881
    %v1914 = vunpack.c.l.b16 %v1882
    %v1915 = vunpack.c.l.b16 %v1883
    %v1916 = vunpack.c.l.b16 %v1884
    %v1917 = vunpack.c.l.b16 %v1885
    %v1918 = vpack.c.b16 %v1903, %v1902
    %v1919 = vpack.c.b16 %v1905, %v1904
    %v1920 = vpack.c.b16 %v1907, %v1906
    %v1921 = vpack.c.b16 %v1909, %v1908
    %v1922 = vpack.c.b16 %v1911, %v1910
    %v1923 = vpack.c.b16 %v1913, %v1912
    %v1924 = vpack.c.b16 %v1915, %v1914
    %v1925 = vpack.c.b16 %v1917, %v1916
    %1934 = vmatpush.bf16.msra.mxu0 %v1925
    %1935 = vmatpush.bf16.msra.mxu0 %v1924
    %1936 = vmatpush.bf16.msra.mxu0 %v1923
    %1937 = vmatpush.bf16.msra.mxu0 %v1922
    %1938 = vmatpush.bf16.msra.mxu0 %v1921
    %1939 = vmatpush.bf16.msra.mxu0 %v1920
    %1940 = vmatpush.bf16.msra.mxu0 %v1919
    %1941 = vmatpush.bf16.msra.mxu0 %v1918
    %1942 = vmatmul.bf16.gmra.mxu0 %v1868
    %v1943 = vpop.f32.mrf.mxu0
    %v1944 = vadd.f32 0.0, %v1943
    %v1945 = vpop.f32.mrf.mxu0
    %v1946 = vadd.f32 0.0, %v1945
    %1947 = vmatmul.bf16.gmra.mxu0 %v1869
    %v1948 = vpop.f32.mrf.mxu0
    %v1949 = vadd.f32 0.0, %v1948
    %v1950 = vpop.f32.mrf.mxu0
    %v1951 = vadd.f32 0.0, %v1950
    %1952 = vdwg.mxu0
    %v1953 = vadd.f32 %v1156, %v1944
    %v1954 = vadd.f32 %v1157, %v1946
    %v1955 = vadd.f32 %v1158, %v1949
    %v1956 = vadd.f32 %v1159, %v1951
    %v1957 = vld [vmem:[%s18] sm:$0x1]
    %v1958 = vld [vmem:[%s19] sm:$0x1]
    %1959 = vadd.xlane.f32.xlu0 %v1953
    %v1960 = vpop.xlane.xlu0 %1959
    %1961 = vadd.xlane.f32.xlu0 %v1954
    %v1962 = vpop.xlane.xlu0 %1961
    %1963 = vadd.xlane.f32.xlu0 %v1955
    %v1964 = vpop.xlane.xlu0 %1963
    %1965 = vadd.xlane.f32.xlu0 %v1956
    %v1966 = vpop.xlane.xlu0 %1965
    %v1967 = vrcp.pop 128.0
    %v1968 = vmul.f32 128.0, %v1967
    %v1969 = vsub.f32 1.0, %v1968
    %v1970 = vmul.f32 %v1967, %v1969
    %v1971 = vadd.f32 %v1967, %v1970
    %vm1972 = vweird.f32 %v1967
    %v1973 = vsel %vm1972, %v1967, %v1971
    %v1974 = vmul.f32 %v1960, %v1973
    %v1975 = vmul.f32 %v1962, %v1973
    %v1976 = vmul.f32 %v1964, %v1973
    %v1977 = vmul.f32 %v1966, %v1973
    %v1978 = vsub.f32 %v1953, %v1974
    %v1979 = vsub.f32 %v1954, %v1975
    %v1980 = vsub.f32 %v1955, %v1976
    %v1981 = vsub.f32 %v1956, %v1977
    %v1982 = vmul.f32 %v1978, %v1978
    %v1983 = vmul.f32 %v1979, %v1979
    %v1984 = vmul.f32 %v1980, %v1980
    %v1985 = vmul.f32 %v1981, %v1981
    %1986 = vadd.xlane.f32.xlu0 %v1982
    %v1987 = vpop.xlane.xlu0 %1986
    %1988 = vadd.xlane.f32.xlu0 %v1983
    %v1989 = vpop.xlane.xlu0 %1988
    %1990 = vadd.xlane.f32.xlu0 %v1984
    %v1991 = vpop.xlane.xlu0 %1990
    %1992 = vadd.xlane.f32.xlu0 %v1985
    %v1993 = vpop.xlane.xlu0 %1992
    %v1994 = vmul.f32 %v1987, %v1973
    %v1995 = vmul.f32 %v1989, %v1973
    %v1996 = vmul.f32 %v1991, %v1973
    %v1997 = vmul.f32 %v1993, %v1973
    %v1998 = vadd.f32 %v1994, 1e-05
    %v1999 = vadd.f32 %v1995, 1e-05
    %v2000 = vadd.f32 %v1996, 1e-05
    %v2001 = vadd.f32 %v1997, 1e-05
    %v2002 = vrsqrt.pop %v1998
    %v2003 = vmul.f32 %v2002, %v1998
    %v2004 = vmul.f32 %v2003, %v2002
    %v2005 = vmul.f32 0.5, %v2004
    %v2006 = vsub.f32 1.5, %v2005
    %v2007 = vmul.f32 %v2002, %v2006
    %vm2008 = vweird.f32 %v1998
    %vm2009 = vweird.f32 %v2002
    %vm2010 = vmor %vm2008, %vm2009
    %v2011 = vsel %vm2010, %v2002, %v2007
    %v2012 = vrsqrt.pop %v1999
    %v2013 = vmul.f32 %v2012, %v1999
    %v2014 = vmul.f32 %v2013, %v2012
    %v2015 = vmul.f32 0.5, %v2014
    %v2016 = vsub.f32 1.5, %v2015
    %v2017 = vmul.f32 %v2012, %v2016
    %vm2018 = vweird.f32 %v1999
    %vm2019 = vweird.f32 %v2012
    %vm2020 = vmor %vm2018, %vm2019
    %v2021 = vsel %vm2020, %v2012, %v2017
    %v2022 = vrsqrt.pop %v2000
    %v2023 = vmul.f32 %v2022, %v2000
    %v2024 = vmul.f32 %v2023, %v2022
    %v2025 = vmul.f32 0.5, %v2024
    %v2026 = vsub.f32 1.5, %v2025
    %v2027 = vmul.f32 %v2022, %v2026
    %vm2028 = vweird.f32 %v2000
    %vm2029 = vweird.f32 %v2022
    %vm2030 = vmor %vm2028, %vm2029
    %v2031 = vsel %vm2030, %v2022, %v2027
    %v2032 = vrsqrt.pop %v2001
    %v2033 = vmul.f32 %v2032, %v2001
    %v2034 = vmul.f32 %v2033, %v2032
    %v2035 = vmul.f32 0.5, %v2034
    %v2036 = vsub.f32 1.5, %v2035
    %v2037 = vmul.f32 %v2032, %v2036
    %vm2038 = vweird.f32 %v2001
    %vm2039 = vweird.f32 %v2032
    %vm2040 = vmor %vm2038, %vm2039
    %v2041 = vsel %vm2040, %v2032, %v2037
    %v2042 = vmul.f32 %v1978, %v2011
    %v2043 = vmul.f32 %v1979, %v2021
    %v2044 = vmul.f32 %v1980, %v2031
    %v2045 = vmul.f32 %v1981, %v2041
    %v2047 = vperm.slane %v1957, 0
    %v2049 = vmul.f32 %v2042, %v2047
    %v2050 = vmul.f32 %v2043, %v2047
    %v2051 = vmul.f32 %v2044, %v2047
    %v2052 = vmul.f32 %v2045, %v2047
    %v2054 = vperm.slane %v1958, 0
    %v2056 = vadd.f32 %v2049, %v2054
    %v2057 = vadd.f32 %v2050, %v2054
    %v2058 = vadd.f32 %v2051, %v2054
    %v2059 = vadd.f32 %v2052, %v2054
    %v2060 = vpack.c.bf16 %v2057, %v2056
    %v2061 = vpack.c.bf16 %v2059, %v2058
    %v2062 = vld [vmem:[%s20] sm:$0xff]
    %v2063 = vld [vmem:[%s20 + $0x8] sm:$0xff]
    %v2064 = vld [vmem:[%s20 + $0x10] sm:$0xff]
    %v2065 = vld [vmem:[%s20 + $0x18] sm:$0xff]
    %v2066 = vld [vmem:[%s20 + $0x20] sm:$0xff]
    %v2067 = vld [vmem:[%s20 + $0x28] sm:$0xff]
    %v2068 = vld [vmem:[%s20 + $0x30] sm:$0xff]
    %v2069 = vld [vmem:[%s20 + $0x38] sm:$0xff]
    %v2070 = vld [vmem:[%s20 + $0x40] sm:$0xff]
    %v2071 = vld [vmem:[%s20 + $0x48] sm:$0xff]
    %v2072 = vld [vmem:[%s20 + $0x50] sm:$0xff]
    %v2073 = vld [vmem:[%s20 + $0x58] sm:$0xff]
    %v2074 = vld [vmem:[%s20 + $0x60] sm:$0xff]
    %v2075 = vld [vmem:[%s20 + $0x68] sm:$0xff]
    %v2076 = vld [vmem:[%s20 + $0x70] sm:$0xff]
    %v2077 = vld [vmem:[%s20 + $0x78] sm:$0xff]
    %v2078 = vld [vmem:[%s21] sm:$0x3]
    %v2080 = vperm.slane %v2078, 0
    %v2081 = vperm.slane %v2078, 1
    %v2100 = vunpack.c.l.b16 %v2062
    %v2101 = vunpack.c.h.b16 %v2062
    %v2102 = vunpack.c.l.b16 %v2063
    %v2103 = vunpack.c.h.b16 %v2063
    %v2104 = vunpack.c.l.b16 %v2064
    %v2105 = vunpack.c.h.b16 %v2064
    %v2106 = vunpack.c.l.b16 %v2065
    %v2107 = vunpack.c.h.b16 %v2065
    %v2108 = vunpack.c.l.b16 %v2066
    %v2109 = vunpack.c.h.b16 %v2066
    %v2110 = vunpack.c.l.b16 %v2067
    %v2111 = vunpack.c.h.b16 %v2067
    %v2112 = vunpack.c.l.b16 %v2068
    %v2113 = vunpack.c.h.b16 %v2068
    %v2114 = vunpack.c.l.b16 %v2069
    %v2115 = vunpack.c.h.b16 %v2069
    %v2116 = vunpack.c.l.b16 %v2070
    %v2117 = vunpack.c.h.b16 %v2070
    %v2118 = vunpack.c.l.b16 %v2071
    %v2119 = vunpack.c.h.b16 %v2071
    %v2120 = vunpack.c.l.b16 %v2072
    %v2121 = vunpack.c.h.b16 %v2072
    %v2122 = vunpack.c.l.b16 %v2073
    %v2123 = vunpack.c.h.b16 %v2073
    %v2124 = vunpack.c.l.b16 %v2074
    %v2125 = vunpack.c.h.b16 %v2074
    %v2126 = vunpack.c.l.b16 %v2075
    %v2127 = vunpack.c.h.b16 %v2075
    %v2128 = vunpack.c.l.b16 %v2076
    %v2129 = vunpack.c.h.b16 %v2076
    %v2130 = vunpack.c.l.b16 %v2077
    %v2131 = vunpack.c.h.b16 %v2077
    %v2132 = vpack.c.b16 %v2102, %v2100
    %v2133 = vpack.c.b16 %v2103, %v2101
    %v2134 = vpack.c.b16 %v2106, %v2104
    %v2135 = vpack.c.b16 %v2107, %v2105
    %v2136 = vpack.c.b16 %v2110, %v2108
    %v2137 = vpack.c.b16 %v2111, %v2109
    %v2138 = vpack.c.b16 %v2114, %v2112
    %v2139 = vpack.c.b16 %v2115, %v2113
    %v2140 = vpack.c.b16 %v2118, %v2116
    %v2141 = vpack.c.b16 %v2119, %v2117
    %v2142 = vpack.c.b16 %v2122, %v2120
    %v2143 = vpack.c.b16 %v2123, %v2121
    %v2144 = vpack.c.b16 %v2126, %v2124
    %v2145 = vpack.c.b16 %v2127, %v2125
    %v2146 = vpack.c.b16 %v2130, %v2128
    %v2147 = vpack.c.b16 %v2131, %v2129
    %2164 = vmatpush.bf16.msra.mxu0 %v2146
    %2165 = vmatpush.bf16.msra.mxu0 %v2144
    %2166 = vmatpush.bf16.msra.mxu0 %v2142
    %2167 = vmatpush.bf16.msra.mxu0 %v2140
    %2168 = vmatpush.bf16.msra.mxu0 %v2138
    %2169 = vmatpush.bf16.msra.mxu0 %v2136
    %2170 = vmatpush.bf16.msra.mxu0 %v2134
    %2171 = vmatpush.bf16.msra.mxu0 %v2132
    %2172 = vmatmul.bf16.gmra.mxu0 %v2060
    %v2173 = vpop.f32.mrf.mxu0
    %v2174 = vadd.f32 %v2080, %v2173
    %v2175 = vpop.f32.mrf.mxu0
    %v2176 = vadd.f32 %v2080, %v2175
    %2177 = vmatmul.bf16.gmra.mxu0 %v2061
    %v2178 = vpop.f32.mrf.mxu0
    %v2179 = vadd.f32 %v2080, %v2178
    %v2180 = vpop.f32.mrf.mxu0
    %v2181 = vadd.f32 %v2080, %v2180
    %2182 = vdwg.mxu0
    %2183 = vmatpush.bf16.msra.mxu0 %v2147
    %2184 = vmatpush.bf16.msra.mxu0 %v2145
    %2185 = vmatpush.bf16.msra.mxu0 %v2143
    %2186 = vmatpush.bf16.msra.mxu0 %v2141
    %2187 = vmatpush.bf16.msra.mxu0 %v2139
    %2188 = vmatpush.bf16.msra.mxu0 %v2137
    %2189 = vmatpush.bf16.msra.mxu0 %v2135
    %2190 = vmatpush.bf16.msra.mxu0 %v2133
    %2191 = vmatmul.bf16.gmra.mxu0 %v2060
    %v2192 = vpop.f32.mrf.mxu0
    %v2193 = vadd.f32 %v2081, %v2192
    %v2194 = vpop.f32.mrf.mxu0
    %v2195 = vadd.f32 %v2081, %v2194
    %2196 = vmatmul.bf16.gmra.mxu0 %v2061
    %v2197 = vpop.f32.mrf.mxu0
    %v2198 = vadd.f32 %v2081, %v2197
    %v2199 = vpop.f32.mrf.mxu0
    %v2200 = vadd.f32 %v2081, %v2199
    %2201 = vdwg.mxu0
    %v2202 = vmax.f32 %v2174, 0.0
    %v2203 = vmax.f32 %v2193, 0.0
    %v2204 = vmax.f32 %v2176, 0.0
    %v2205 = vmax.f32 %v2195, 0.0
    %v2206 = vmax.f32 %v2179, 0.0
    %v2207 = vmax.f32 %v2198, 0.0
    %v2208 = vmax.f32 %v2181, 0.0
    %v2209 = vmax.f32 %v2200, 0.0
    %v2210 = vpack.c.bf16 %v2204, %v2202
    %v2211 = vpack.c.bf16 %v2205, %v2203
    %v2212 = vpack.c.bf16 %v2208, %v2206
    %v2213 = vpack.c.bf16 %v2209, %v2207
    %v2214 = vld [vmem:[#allocation6] sm:$0xf]
    %v2215 = vld [vmem:[#allocation6 + $0x4] sm:$0xf]
    %v2216 = vld [vmem:[#allocation6 + $0x8] sm:$0xf]
    %v2217 = vld [vmem:[#allocation6 + $0xc] sm:$0xf]
    %v2218 = vld [vmem:[#allocation6 + $0x10] sm:$0xf]
    %v2219 = vld [vmem:[#allocation6 + $0x14] sm:$0xf]
    %v2220 = vld [vmem:[#allocation6 + $0x18] sm:$0xf]
    %v2221 = vld [vmem:[#allocation6 + $0x1c] sm:$0xf]
    %v2222 = vld [vmem:[#allocation6 + $0x20] sm:$0xf]
    %v2223 = vld [vmem:[#allocation6 + $0x24] sm:$0xf]
    %v2224 = vld [vmem:[#allocation6 + $0x28] sm:$0xf]
    %v2225 = vld [vmem:[#allocation6 + $0x2c] sm:$0xf]
    %v2226 = vld [vmem:[#allocation6 + $0x30] sm:$0xf]
    %v2227 = vld [vmem:[#allocation6 + $0x34] sm:$0xf]
    %v2228 = vld [vmem:[#allocation6 + $0x38] sm:$0xf]
    %v2229 = vld [vmem:[#allocation6 + $0x3c] sm:$0xf]
    %v2230 = vld [vmem:[#allocation6 + $0x40] sm:$0xf]
    %v2231 = vld [vmem:[#allocation6 + $0x44] sm:$0xf]
    %v2232 = vld [vmem:[#allocation6 + $0x48] sm:$0xf]
    %v2233 = vld [vmem:[#allocation6 + $0x4c] sm:$0xf]
    %v2234 = vld [vmem:[#allocation6 + $0x50] sm:$0xf]
    %v2235 = vld [vmem:[#allocation6 + $0x54] sm:$0xf]
    %v2236 = vld [vmem:[#allocation6 + $0x58] sm:$0xf]
    %v2237 = vld [vmem:[#allocation6 + $0x5c] sm:$0xf]
    %v2238 = vld [vmem:[#allocation6 + $0x60] sm:$0xf]
    %v2239 = vld [vmem:[#allocation6 + $0x64] sm:$0xf]
    %v2240 = vld [vmem:[#allocation6 + $0x68] sm:$0xf]
    %v2241 = vld [vmem:[#allocation6 + $0x6c] sm:$0xf]
    %v2242 = vld [vmem:[#allocation6 + $0x70] sm:$0xf]
    %v2243 = vld [vmem:[#allocation6 + $0x74] sm:$0xf]
    %v2244 = vld [vmem:[#allocation6 + $0x78] sm:$0xf]
    %v2245 = vld [vmem:[#allocation6 + $0x7c] sm:$0xf]
    %v2246 = vld [vmem:[%s23] sm:$0x1]
    %v2248 = vperm.slane %v2246, 0
    %v2282 = vunpack.c.l.b16 %v2214
    %v2283 = vunpack.c.l.b16 %v2215
    %v2284 = vunpack.c.l.b16 %v2216
    %v2285 = vunpack.c.l.b16 %v2217
    %v2286 = vunpack.c.l.b16 %v2218
    %v2287 = vunpack.c.l.b16 %v2219
    %v2288 = vunpack.c.l.b16 %v2220
    %v2289 = vunpack.c.l.b16 %v2221
    %v2290 = vunpack.c.l.b16 %v2222
    %v2291 = vunpack.c.l.b16 %v2223
    %v2292 = vunpack.c.l.b16 %v2224
    %v2293 = vunpack.c.l.b16 %v2225
    %v2294 = vunpack.c.l.b16 %v2226
    %v2295 = vunpack.c.l.b16 %v2227
    %v2296 = vunpack.c.l.b16 %v2228
    %v2297 = vunpack.c.l.b16 %v2229
    %v2298 = vunpack.c.l.b16 %v2230
    %v2299 = vunpack.c.l.b16 %v2231
    %v2300 = vunpack.c.l.b16 %v2232
    %v2301 = vunpack.c.l.b16 %v2233
    %v2302 = vunpack.c.l.b16 %v2234
    %v2303 = vunpack.c.l.b16 %v2235
    %v2304 = vunpack.c.l.b16 %v2236
    %v2305 = vunpack.c.l.b16 %v2237
    %v2306 = vunpack.c.l.b16 %v2238
    %v2307 = vunpack.c.l.b16 %v2239
    %v2308 = vunpack.c.l.b16 %v2240
    %v2309 = vunpack.c.l.b16 %v2241
    %v2310 = vunpack.c.l.b16 %v2242
    %v2311 = vunpack.c.l.b16 %v2243
    %v2312 = vunpack.c.l.b16 %v2244
    %v2313 = vunpack.c.l.b16 %v2245
    %v2314 = vpack.c.b16 %v2283, %v2282
    %v2315 = vpack.c.b16 %v2285, %v2284
    %v2316 = vpack.c.b16 %v2287, %v2286
    %v2317 = vpack.c.b16 %v2289, %v2288
    %v2318 = vpack.c.b16 %v2291, %v2290
    %v2319 = vpack.c.b16 %v2293, %v2292
    %v2320 = vpack.c.b16 %v2295, %v2294
    %v2321 = vpack.c.b16 %v2297, %v2296
    %v2322 = vpack.c.b16 %v2299, %v2298
    %v2323 = vpack.c.b16 %v2301, %v2300
    %v2324 = vpack.c.b16 %v2303, %v2302
    %v2325 = vpack.c.b16 %v2305, %v2304
    %v2326 = vpack.c.b16 %v2307, %v2306
    %v2327 = vpack.c.b16 %v2309, %v2308
    %v2328 = vpack.c.b16 %v2311, %v2310
    %v2329 = vpack.c.b16 %v2313, %v2312
    %2346 = vmatpush.bf16.msra.mxu0 %v2321
    %2347 = vmatpush.bf16.msra.mxu0 %v2320
    %2348 = vmatpush.bf16.msra.mxu0 %v2319
    %2349 = vmatpush.bf16.msra.mxu0 %v2318
    %2350 = vmatpush.bf16.msra.mxu0 %v2317
    %2351 = vmatpush.bf16.msra.mxu0 %v2316
    %2352 = vmatpush.bf16.msra.mxu0 %v2315
    %2353 = vmatpush.bf16.msra.mxu0 %v2314
    %2354 = vmatmul.bf16.gmra.mxu0 %v2210
    %v2355 = vpop.f32.mrf.mxu0
    %v2356 = vadd.f32 %v2248, %v2355
    %v2357 = vpop.f32.mrf.mxu0
    %v2358 = vadd.f32 %v2248, %v2357
    %2359 = vmatmul.bf16.gmra.mxu0 %v2212
    %v2360 = vpop.f32.mrf.mxu0
    %v2361 = vadd.f32 %v2248, %v2360
    %v2362 = vpop.f32.mrf.mxu0
    %v2363 = vadd.f32 %v2248, %v2362
    %2364 = vdwg.mxu0
    %2365 = vmatpush.bf16.msra.mxu0 %v2329
    %2366 = vmatpush.bf16.msra.mxu0 %v2328
    %2367 = vmatpush.bf16.msra.mxu0 %v2327
    %2368 = vmatpush.bf16.msra.mxu0 %v2326
    %2369 = vmatpush.bf16.msra.mxu0 %v2325
    %2370 = vmatpush.bf16.msra.mxu0 %v2324
    %2371 = vmatpush.bf16.msra.mxu0 %v2323
    %2372 = vmatpush.bf16.msra.mxu0 %v2322
    %2373 = vmatmul.bf16.gmra.mxu0 %v2211
    %v2374 = vpop.f32.mrf.mxu0
    %v2375 = vadd.f32 %v2356, %v2374
    %v2376 = vpop.f32.mrf.mxu0
    %v2377 = vadd.f32 %v2358, %v2376
    %2378 = vmatmul.bf16.gmra.mxu0 %v2213
    %v2379 = vpop.f32.mrf.mxu0
    %v2380 = vadd.f32 %v2361, %v2379
    %v2381 = vpop.f32.mrf.mxu0
    %v2382 = vadd.f32 %v2363, %v2381
    %2383 = vdwg.mxu0
    %v2384 = vadd.f32 %v2056, %v2375
    %v2385 = vadd.f32 %v2057, %v2377
    %v2386 = vadd.f32 %v2058, %v2380
    %v2387 = vadd.f32 %v2059, %v2382
    %v2388 = vld [vmem:[%s24] sm:$0x1]
    %v2389 = vld [vmem:[%s25] sm:$0x1]
    %2390 = vadd.xlane.f32.xlu0 %v2384
    %v2391 = vpop.xlane.xlu0 %2390
    %2392 = vadd.xlane.f32.xlu0 %v2385
    %v2393 = vpop.xlane.xlu0 %2392
    %2394 = vadd.xlane.f32.xlu0 %v2386
    %v2395 = vpop.xlane.xlu0 %2394
    %2396 = vadd.xlane.f32.xlu0 %v2387
    %v2397 = vpop.xlane.xlu0 %2396
    %v2398 = vmul.f32 %v2391, %v1973
    %v2399 = vmul.f32 %v2393, %v1973
    %v2400 = vmul.f32 %v2395, %v1973
    %v2401 = vmul.f32 %v2397, %v1973
    %v2402 = vsub.f32 %v2384, %v2398
    %v2403 = vsub.f32 %v2385, %v2399
    %v2404 = vsub.f32 %v2386, %v2400
    %v2405 = vsub.f32 %v2387, %v2401
    %v2406 = vmul.f32 %v2402, %v2402
    %v2407 = vmul.f32 %v2403, %v2403
    %v2408 = vmul.f32 %v2404, %v2404
    %v2409 = vmul.f32 %v2405, %v2405
    %2410 = vadd.xlane.f32.xlu0 %v2406
    %v2411 = vpop.xlane.xlu0 %2410
    %2412 = vadd.xlane.f32.xlu0 %v2407
    %v2413 = vpop.xlane.xlu0 %2412
    %2414 = vadd.xlane.f32.xlu0 %v2408
    %v2415 = vpop.xlane.xlu0 %2414
    %2416 = vadd.xlane.f32.xlu0 %v2409
    %v2417 = vpop.xlane.xlu0 %2416
    %v2418 = vmul.f32 %v2411, %v1973
    %v2419 = vmul.f32 %v2413, %v1973
    %v2420 = vmul.f32 %v2415, %v1973
    %v2421 = vmul.f32 %v2417, %v1973
    %v2422 = vadd.f32 %v2418, 1e-05
    %v2423 = vadd.f32 %v2419, 1e-05
    %v2424 = vadd.f32 %v2420, 1e-05
    %v2425 = vadd.f32 %v2421, 1e-05
    %v2426 = vrsqrt.pop %v2422
    %v2427 = vmul.f32 %v2426, %v2422
    %v2428 = vmul.f32 %v2427, %v2426
    %v2429 = vmul.f32 0.5, %v2428
    %v2430 = vsub.f32 1.5, %v2429
    %v2431 = vmul.f32 %v2426, %v2430
    %vm2432 = vweird.f32 %v2422
    %vm2433 = vweird.f32 %v2426
    %vm2434 = vmor %vm2432, %vm2433
    %v2435 = vsel %vm2434, %v2426, %v2431
    %v2436 = vrsqrt.pop %v2423
    %v2437 = vmul.f32 %v2436, %v2423
    %v2438 = vmul.f32 %v2437, %v2436
    %v2439 = vmul.f32 0.5, %v2438
    %v2440 = vsub.f32 1.5, %v2439
    %v2441 = vmul.f32 %v2436, %v2440
    %vm2442 = vweird.f32 %v2423
    %vm2443 = vweird.f32 %v2436
    %vm2444 = vmor %vm2442, %vm2443
    %v2445 = vsel %vm2444, %v2436, %v2441
    %v2446 = vrsqrt.pop %v2424
    %v2447 = vmul.f32 %v2446, %v2424
    %v2448 = vmul.f32 %v2447, %v2446
    %v2449 = vmul.f32 0.5, %v2448
    %v2450 = vsub.f32 1.5, %v2449
    %v2451 = vmul.f32 %v2446, %v2450
    %vm2452 = vweird.f32 %v2424
    %vm2453 = vweird.f32 %v2446
    %vm2454 = vmor %vm2452, %vm2453
    %v2455 = vsel %vm2454, %v2446, %v2451
    %v2456 = vrsqrt.pop %v2425
    %v2457 = vmul.f32 %v2456, %v2425
    %v2458 = vmul.f32 %v2457, %v2456
    %v2459 = vmul.f32 0.5, %v2458
    %v2460 = vsub.f32 1.5, %v2459
    %v2461 = vmul.f32 %v2456, %v2460
    %vm2462 = vweird.f32 %v2425
    %vm2463 = vweird.f32 %v2456
    %vm2464 = vmor %vm2462, %vm2463
    %v2465 = vsel %vm2464, %v2456, %v2461
    %v2466 = vmul.f32 %v2402, %v2435
    %v2467 = vmul.f32 %v2403, %v2445
    %v2468 = vmul.f32 %v2404, %v2455
    %v2469 = vmul.f32 %v2405, %v2465
    %v2471 = vperm.slane %v2388, 0
    %v2473 = vmul.f32 %v2466, %v2471
    %v2474 = vmul.f32 %v2467, %v2471
    %v2475 = vmul.f32 %v2468, %v2471
    %v2476 = vmul.f32 %v2469, %v2471
    %v2478 = vperm.slane %v2389, 0
    %v2480 = vadd.f32 %v2473, %v2478
    %v2481 = vadd.f32 %v2474, %v2478
    %v2482 = vadd.f32 %v2475, %v2478
    %v2483 = vadd.f32 %v2476, %v2478
    %v2484 = vpack.c.bf16 %v2481, %v2480
    %v2485 = vpack.c.bf16 %v2483, %v2482
    %v2486 = vld [vmem:[#allocation7] sm:$0xf]
    %v2487 = vld [vmem:[#allocation7 + $0x4] sm:$0xf]
    %v2488 = vld [vmem:[#allocation7 + $0x8] sm:$0xf]
    %v2489 = vld [vmem:[#allocation7 + $0xc] sm:$0xf]
    %v2490 = vld [vmem:[#allocation7 + $0x10] sm:$0xf]
    %v2491 = vld [vmem:[#allocation7 + $0x14] sm:$0xf]
    %v2492 = vld [vmem:[#allocation7 + $0x18] sm:$0xf]
    %v2493 = vld [vmem:[#allocation7 + $0x1c] sm:$0xf]
    %v2494 = vld [vmem:[#allocation7 + $0x20] sm:$0xf]
    %v2495 = vld [vmem:[#allocation7 + $0x24] sm:$0xf]
    %v2496 = vld [vmem:[#allocation7 + $0x28] sm:$0xf]
    %v2497 = vld [vmem:[#allocation7 + $0x2c] sm:$0xf]
    %v2498 = vld [vmem:[#allocation7 + $0x30] sm:$0xf]
    %v2499 = vld [vmem:[#allocation7 + $0x34] sm:$0xf]
    %v2500 = vld [vmem:[#allocation7 + $0x38] sm:$0xf]
    %v2501 = vld [vmem:[#allocation7 + $0x3c] sm:$0xf]
    %v2502 = vld [vmem:[%s27] sm:$0x1]
    %v2504 = vperm.slane %v2502, 0
    %v2522 = vunpack.c.l.b16 %v2486
    %v2523 = vunpack.c.l.b16 %v2487
    %v2524 = vunpack.c.l.b16 %v2488
    %v2525 = vunpack.c.l.b16 %v2489
    %v2526 = vunpack.c.l.b16 %v2490
    %v2527 = vunpack.c.l.b16 %v2491
    %v2528 = vunpack.c.l.b16 %v2492
    %v2529 = vunpack.c.l.b16 %v2493
    %v2530 = vunpack.c.l.b16 %v2494
    %v2531 = vunpack.c.l.b16 %v2495
    %v2532 = vunpack.c.l.b16 %v2496
    %v2533 = vunpack.c.l.b16 %v2497
    %v2534 = vunpack.c.l.b16 %v2498
    %v2535 = vunpack.c.l.b16 %v2499
    %v2536 = vunpack.c.l.b16 %v2500
    %v2537 = vunpack.c.l.b16 %v2501
    %v2538 = vpack.c.b16 %v2523, %v2522
    %v2539 = vpack.c.b16 %v2525, %v2524
    %v2540 = vpack.c.b16 %v2527, %v2526
    %v2541 = vpack.c.b16 %v2529, %v2528
    %v2542 = vpack.c.b16 %v2531, %v2530
    %v2543 = vpack.c.b16 %v2533, %v2532
    %v2544 = vpack.c.b16 %v2535, %v2534
    %v2545 = vpack.c.b16 %v2537, %v2536
    %2554 = vmatpush.bf16.msra.mxu0 %v2545
    %2555 = vmatpush.bf16.msra.mxu0 %v2544
    %2556 = vmatpush.bf16.msra.mxu0 %v2543
    %2557 = vmatpush.bf16.msra.mxu0 %v2542
    %2558 = vmatpush.bf16.msra.mxu0 %v2541
    %2559 = vmatpush.bf16.msra.mxu0 %v2540
    %2560 = vmatpush.bf16.msra.mxu0 %v2539
    %2561 = vmatpush.bf16.msra.mxu0 %v2538
    %2562 = vmatmul.bf16.gmra.mxu0 %v2484
    %v2563 = vpop.f32.mrf.mxu0
    %v2564 = vadd.f32 %v2504, %v2563
    %v2565 = vpop.f32.mrf.mxu0
    %v2566 = vadd.f32 %v2504, %v2565
    %2567 = vmatmul.bf16.gmra.mxu0 %v2485
    %v2568 = vpop.f32.mrf.mxu0
    %v2569 = vadd.f32 %v2504, %v2568
    %v2570 = vpop.f32.mrf.mxu0
    %v2571 = vadd.f32 %v2504, %v2570
    %2572 = vdwg.mxu0
    %2573 = vst [vmem:[%s28] sm:$0xff] %v2564
    %2574 = vst [vmem:[%s28 + $0x8] sm:$0xff] %v2566
    %2575 = vst [vmem:[%s28 + $0x10] sm:$0xff] %v2569
    %2576 = vst [vmem:[%s28 + $0x18] sm:$0xff] %v2571
    // Predicated region
    $region130: #{bead_picker_forward.1} parent=1 // pred_check
      _
    $region131: #{bead_picker_forward.1} parent=1 // pred_check_branch
      %2578 = sbr.rel (0) target = $region133
    $region132: #{bead_picker_forward.1} parent=1 // pred_region
      _
    $region133: #{bead_picker_forward.1} parent=1 // pred_fallthru
      _
    // Predicated region
    $region134: #{bead_picker_forward.1} parent=1 // pred_check
      _
    $region135: #{bead_picker_forward.1} parent=1 // pred_check_branch
      %2580 = sbr.rel (0) target = $region137
    $region136: #{bead_picker_forward.1} parent=1 // pred_region
      _
    $region137: #{bead_picker_forward.1} parent=1 // pred_fallthru
      _
    %2581 = vsyncpa [#allocation3], 1
    %2582 = vsyncpa [#allocation5], 1
    %2583 = vsyncpa [#allocation8], 1

</llo_original>
